<compile_context>
chip_gen: v6e
topology: v6e:2x2x1
jax: 0.10.0
libtpu: 0.0.40
codegen_flags: <defaults>
</compile_context>

<pallas_src>
import functools
import math

import jax
import jax.numpy as jnp
from jax.experimental import pallas as pl
from jax.experimental.pallas import tpu as pltpu


def _round_up(x, m):
    return ((x + m - 1) // m) * m


def _ln_relu(h, g_ref, be_ref, eps, inv_c):
    """Single-pass LayerNorm over the true channel count (padded lanes are exactly
    zero so they do not perturb the sums), biased variance, eps inside sqrt, ReLU."""
    s = jnp.sum(h, axis=-1, keepdims=True)
    s2 = jnp.sum(h * h, axis=-1, keepdims=True)
    mean = s * inv_c
    var = jnp.maximum(s2 * inv_c - mean * mean, 0.0)
    norm = (h - mean) * jax.lax.rsqrt(var + eps)
    return jnp.maximum(norm * g_ref[...] + be_ref[...], 0.0)


def _residual_block_b_kernel(x_ref, xh_ref, w1_ref, b1_ref, g1_ref, be1_ref,
                             w2_ref, b2_ref, g2_ref, be2_ref, o_ref,
                             xbuf, h1buf,
                             *, kernel_size, dilation, eps, seq_tile,
                             halo_rows, num_channels):
    K = kernel_size
    d1 = dilation
    d2 = 2 * dilation
    H1 = (K - 1) * d1          # conv1 causal history (rows)
    H2 = (K - 1) * d2          # conv2 causal history (rows)
    Hp = halo_rows             # sublane-aligned halo staged ahead of the tile (>= H1 + H2)
    TT = seq_tile
    Cp = o_ref.shape[-1]
    inv_c = 1.0 / float(num_channels)

    t = pl.program_id(1)

    # Stage the causally padded input tile [halo | current tile] into one scratch,
    # cast once to the MXU compute dtype.  At t == 0 the halo is all times < 0 and
    # must be zero (ZeroPad2d); otherwise it is the Hp rows DMA'd just before the tile.
    @pl.when(t == 0)
    def _():
        xbuf[0:Hp, :] = jnp.zeros((Hp, Cp), xbuf.dtype)

    @pl.when(t > 0)
    def _():
        xbuf[0:Hp, :] = xh_ref[...].astype(xbuf.dtype)

    xbuf[Hp:Hp + TT, :] = x_ref[...].astype(xbuf.dtype)

    # ---- conv1 (dilation d1): K accumulating MXU dots, f32 accumulation.
    # Rows cover times [tile_start - H2, tile_start + TT) so conv2's causal halo is
    # recomputed locally (no cross-tile dependency).
    n1 = H2 + TT
    base1 = Hp - (H1 + H2)
    h1 = jnp.zeros((n1, Cp), jnp.float32)
    for k in range(K):
        h1 = h1 + jnp.dot(xbuf[base1 + k * d1: base1 + k * d1 + n1, :], w1_ref[k],
                          preferred_element_type=jnp.float32)
    h1 = _ln_relu(h1 + b1_ref[...], g1_ref, be1_ref, eps, inv_c)
    h1buf[...] = h1.astype(h1buf.dtype)

    # ZeroPad2d semantics: conv2 sees zeros (not LN(ReLU(conv1(0)))) for times < 0.
    @pl.when(t == 0)
    def _():
        h1buf[0:H2, :] = jnp.zeros((H2, Cp), h1buf.dtype)

    # ---- conv2 (dilation 2*d1): K accumulating MXU dots.
    h2 = jnp.zeros((TT, Cp), jnp.float32)
    for k in range(K):
        h2 = h2 + jnp.dot(h1buf[k * d2: k * d2 + TT, :], w2_ref[k],
                          preferred_element_type=jnp.float32)
    h2 = _ln_relu(h2 + b2_ref[...], g2_ref, be2_ref, eps, inv_c)

    # Residual add in f32, single lane-dense store.
    o_ref[...] = (h2 + x_ref[...].astype(jnp.float32)).astype(o_ref.dtype)


def _vmem_budget():
    """~70% of the device's VMEM (v5e/v6e: ~90 MiB, v7x: ~45 MiB); safe fallback."""
    try:
        info = pltpu.get_tpu_info()
        cap = getattr(info, "vmem_capacity_bytes", None)
        if cap:
            return int(cap * 0.70)
    except Exception:
        pass
    return 48 * 1024 * 1024


def _pick_seq_tile(T, Hp, H2, Cp, in_isz, c_isz, K, budget, max_seq_tile, batch):
    """Largest multiple of Hp (<= max_seq_tile, >= Hp) whose working set fits the budget."""
    def est(tt):
        blocks = 2 * (2 * tt + Hp) * Cp * in_isz            # x tile + out + halo, double-buffered
        weights = 2 * 2 * K * Cp * Cp * c_isz               # two weight tensors, double-buffered
        scratch = ((Hp + tt) + (H2 + tt)) * Cp * c_isz      # xbuf + h1buf
        temps = 6 * (H2 + tt) * Cp * 4                      # f32 h1/h2/LN temporaries (rough)
        return blocks + weights + scratch + temps + (1 << 20)

    tt = max(Hp, (min(max_seq_tile, _round_up(T, Hp)) // Hp) * Hp)
    while tt > Hp and est(tt) > budget:
        tt -= Hp
    # Keep both v7x TensorCores busy on small calls.
    while batch * ((T + tt - 1) // tt) < 2 and tt > Hp:
        tt -= Hp
    return tt


def residual_block_b(x, params, *, kernel_size, dilation, eps=1e-8,
                     compute_dtype=jnp.bfloat16, max_seq_tile=2048):
    """x: (B, T, C); params = (w1, b1, g1, be1, w2, b2, g2, be2);
       w*: (K, C_in, C_out) with w[k, ci, co] = W_pt[co, ci, 0, k]; b/g/be: (C,) or (1, C)."""
    B, T, C = x.shape
    w1, b1, g1, be1, w2, b2, g2, be2 = params
    K = kernel_size
    assert K >= 2 and dilation >= 1
    d1, d2 = dilation, 2 * dilation
    H1, H2 = (K - 1) * d1, (K - 1) * d2
    Hp = _round_up(H1 + H2, 8)            # sublane-aligned causal halo rows

    Cp = _round_up(C, 128)                # lane-dense channel padding
    cdt = jnp.dtype(compute_dtype)
    in_isz = jnp.dtype(x.dtype).itemsize

    budget = _vmem_budget()
    TT = _pick_seq_tile(T, Hp, H2, Cp, in_isz, cdt.itemsize, K, budget, max_seq_tile, B)
    nt = -(-T // TT)
    Tp = nt * TT

    # Pad once: channels -> Cp (lane-dense), time -> Tp (trailing rows trimmed after;
    # causal conv means padded future rows never affect real outputs).
    x_p = jnp.pad(x, ((0, 0), (0, Tp - T), (0, Cp - C)))

    def prep_w(w):
        return jnp.pad(w, ((0, 0), (0, Cp - C), (0, Cp - C))).astype(compute_dtype)

    def prep_v(v):
        return jnp.pad(v.reshape(1, C).astype(jnp.float32), ((0, 0), (0, Cp - C)))

    w1p, w2p = prep_w(w1), prep_w(w2)
    b1p, g1p, be1p = prep_v(b1), prep_v(g1), prep_v(be1)
    b2p, g2p, be2p = prep_v(b2), prep_v(g2), prep_v(be2)

    kern = functools.partial(_residual_block_b_kernel,
                             kernel_size=K, dilation=dilation, eps=eps,
                             seq_tile=TT, halo_rows=Hp, num_channels=C)

    steps = TT // Hp    # halo block-index stride (TT is a multiple of Hp by construction)

    def wspec():
        return pl.BlockSpec((K, Cp, Cp), lambda b, t: (0, 0, 0))

    def vspec():
        return pl.BlockSpec((1, Cp), lambda b, t: (0, 0))

    out = pl.pallas_call(
        kern,
        out_shape=jax.ShapeDtypeStruct((B, Tp, Cp), x.dtype),
        grid_spec=pltpu.PrefetchScalarGridSpec(
            num_scalar_prefetch=0,
            grid=(B, nt),
            in_specs=[
                # current tile
                pl.BlockSpec((None, TT, Cp), lambda b, t: (b, t, 0)),
                # causal halo: the Hp rows immediately before the tile, read from the
                # SAME array (clamped to block 0 at t == 0; kernel zeros it there).
                pl.BlockSpec((None, Hp, Cp),
                             lambda b, t: (b, jnp.maximum(t * steps - 1, 0), 0)),
                wspec(), vspec(), vspec(), vspec(),
                wspec(), vspec(), vspec(), vspec(),
            ],
            out_specs=pl.BlockSpec((None, TT, Cp), lambda b, t: (b, t, 0)),
            scratch_shapes=[
                pltpu.VMEM((Hp + TT, Cp), cdt),       # causally padded input tile (compute dtype)
                pltpu.VMEM((H2 + TT, Cp), cdt),       # conv1 output incl. recomputed conv2 halo
            ],
        ),
        compiler_params=pltpu.CompilerParams(
            dimension_semantics=("parallel", "parallel"),
            vmem_limit_bytes=int(budget),
        ),
        # TODO(synk): on v7x, single-buffer the constant weight operands
        # (pipeline_mode=pl.Buffered(1)) to reclaim ~2*K*Cp*Cp bytes of VMEM.
    )(x_p, x_p, w1p, b1p, g1p, be1p, w2p, b2p, g2p, be2p)

    return out[:, :T, :C]


# ---------------- pure-JAX reference (for correctness check) ----------------
def _ref_causal_conv(inp, w, b, dil, K):
    B, T, C = inp.shape
    pad = (K - 1) * dil
    xp = jnp.pad(inp, ((0, 0), (pad, 0), (0, 0)))
    out = jnp.broadcast_to(b.reshape(1, 1, -1), (B, T, w.shape[2]))
    for k in range(K):
        out = out + jnp.einsum('btc,cd->btd', xp[:, k * dil:k * dil + T, :], w[k])
    return out


def _ref_ln_relu(h, g, be, eps=1e-8):
    m = h.mean(-1, keepdims=True)
    v = jnp.square(h - m).mean(-1, keepdims=True)
    return jnp.maximum((h - m) / jnp.sqrt(v + eps) * g.reshape(1, 1, -1)
                       + be.reshape(1, 1, -1), 0.0)


def _reference(x, params, kernel_size, dilation):
    w1, b1, g1, be1, w2, b2, g2, be2 = params
    h = _ref_causal_conv(x, w1, b1, dilation, kernel_size)
    h = _ref_ln_relu(h, g1, be1)
    h = _ref_causal_conv(h, w2, b2, dilation * 2, kernel_size)
    h = _ref_ln_relu(h, g2, be2)
    return h + x


if __name__ == "__main__":
    B, T, C = 2, 48, 32          # batch, seq_len, channels (in_channel == out_channel)
    K = 3                        # kernel_size

    key = jax.random.PRNGKey(0)
    kx, kw1, kb1, kw2, kb2, kg1, kbe1, kg2, kbe2 = jax.random.split(key, 9)

    x = jax.random.normal(kx, (B, T, C), jnp.float32)

    bound = 1.0 / math.sqrt(C * K)   # ~ PyTorch Conv2d default init scale
    w1 = jax.random.uniform(kw1, (K, C, C), jnp.float32, -bound, bound)
    b1 = jax.random.uniform(kb1, (1, C), jnp.float32, -bound, bound)
    w2 = jax.random.uniform(kw2, (K, C, C), jnp.float32, -bound, bound)
    b2 = jax.random.uniform(kb2, (1, C), jnp.float32, -bound, bound)
    g1 = 1.0 + 0.1 * jax.random.normal(kg1, (1, C), jnp.float32)
    be1 = 0.1 * jax.random.normal(kbe1, (1, C), jnp.float32)
    g2 = 1.0 + 0.1 * jax.random.normal(kg2, (1, C), jnp.float32)
    be2 = 0.1 * jax.random.normal(kbe2, (1, C), jnp.float32)
    params = (w1, b1, g1, be1, w2, b2, g2, be2)

    # (dilation, seq_len, compute dtype, tolerance): exercises the multi-tile causal
    # halo path, the non-multiple-of-tile T (padding) path, and both the exact-f32
    # and fast-bf16 MXU paths.
    configs = [
        (1, 48, jnp.float32, 1e-4),
        (1, 40, jnp.bfloat16, 1e-1),
        (2, 48, jnp.bfloat16, 1e-1),
    ]
    for dil, t_len, cdt, tol in configs:
        xi = x[:, :t_len]
        out = residual_block_b(xi, params, kernel_size=K, dilation=dil,
                               compute_dtype=cdt, max_seq_tile=16)
        out = jax.block_until_ready(out)
        ref = _reference(xi, params, K, dil)
        assert out.shape == (B, t_len, C)
        err = float(jnp.max(jnp.abs(out - ref)))
        assert err <= tol, f"dilation={dil}, T={t_len}, {cdt}: max abs err = {err}"

    print("KERNEL_OK")
</pallas_src>

<mosaic_0001>
module attributes {stable_mosaic.version = 11 : i64} {
  func.func @_residual_block_b_kernel(%arg0: i32, %arg1: i32, %arg2: memref<1x16x128xf32, #tpu.memory_space<vmem>>, %arg3: memref<1x8x128xf32, #tpu.memory_space<vmem>>, %arg4: memref<3x128x128xf32, #tpu.memory_space<vmem>>, %arg5: memref<1x128xf32, #tpu.memory_space<vmem>>, %arg6: memref<1x128xf32, #tpu.memory_space<vmem>>, %arg7: memref<1x128xf32, #tpu.memory_space<vmem>>, %arg8: memref<3x128x128xf32, #tpu.memory_space<vmem>>, %arg9: memref<1x128xf32, #tpu.memory_space<vmem>>, %arg10: memref<1x128xf32, #tpu.memory_space<vmem>>, %arg11: memref<1x128xf32, #tpu.memory_space<vmem>>, %arg12: memref<1x16x128xf32, #tpu.memory_space<vmem>>, %arg13: memref<24x128xf32, #tpu.memory_space<vmem>>, %arg14: memref<20x128xf32, #tpu.memory_space<vmem>>) attributes {dimension_semantics = [#tpu.dimension_semantics<parallel>, #tpu.dimension_semantics<parallel>], iteration_bounds = array<i64: 2, 3>, scalar_prefetch = 0 : i64, scratch_operands = 2 : i64, tpu.core_type = #tpu.core_type<tc>, window_params = [{transform_indices = @transform_0, window_bounds = array<i64: 1, 16, 128>}, {transform_indices = @transform_1, window_bounds = array<i64: 1, 8, 128>}, {pipeline_mode = #tpu.pipeline_mode<synchronous>, transform_indices = @transform_2, window_bounds = array<i64: 3, 128, 128>}, {pipeline_mode = #tpu.pipeline_mode<synchronous>, transform_indices = @transform_3, window_bounds = array<i64: 1, 128>}, {pipeline_mode = #tpu.pipeline_mode<synchronous>, transform_indices = @transform_4, window_bounds = array<i64: 1, 128>}, {pipeline_mode = #tpu.pipeline_mode<synchronous>, transform_indices = @transform_5, window_bounds = array<i64: 1, 128>}, {pipeline_mode = #tpu.pipeline_mode<synchronous>, transform_indices = @transform_6, window_bounds = array<i64: 3, 128, 128>}, {pipeline_mode = #tpu.pipeline_mode<synchronous>, transform_indices = @transform_7, window_bounds = array<i64: 1, 128>}, {pipeline_mode = #tpu.pipeline_mode<synchronous>, transform_indices = @transform_8, window_bounds = array<i64: 1, 128>}, {pipeline_mode = #tpu.pipeline_mode<synchronous>, transform_indices = @transform_9, window_bounds = array<i64: 1, 128>}, {transform_indices = @transform_10, window_bounds = array<i64: 1, 16, 128>}]} {
    %c0_i32 = arith.constant 0 : i32
    %0 = arith.cmpi eq, %arg1, %c0_i32 : i32
    %1 = arith.extui %0 : i1 to i32
    %c0_i32_0 = arith.constant 0 : i32
    %2 = arith.cmpi ne, %1, %c0_i32_0 : i32
    scf.if %2 {
      %cst_75 = arith.constant 0.000000e+00 : f32
      %113 = vector.broadcast %cst_75 : f32 to vector<8x128xf32>
      %c0_76 = arith.constant 0 : index
      %c0_77 = arith.constant 0 : index
      %114 = vector.load %arg13[%c0_76, %c0_77] : memref<24x128xf32, #tpu.memory_space<vmem>>, vector<8x128xf32>
      tpu.vector_store %arg13[%c0_76, %c0_77], %113 {strides = array<i32>} : memref<24x128xf32, #tpu.memory_space<vmem>>, vector<8x128xf32>,
    } else {
    }
    %c0_i32_1 = arith.constant 0 : i32
    %3 = arith.cmpi sgt, %arg1, %c0_i32_1 : i32
    %4 = arith.extui %3 : i1 to i32
    %c0_i32_2 = arith.constant 0 : i32
    %5 = arith.cmpi ne, %4, %c0_i32_2 : i32
    scf.if %5 {
      %c0_75 = arith.constant 0 : index
      %c0_76 = arith.constant 0 : index
      %c0_77 = arith.constant 0 : index
      %113 = vector.load %arg3[%c0_75, %c0_76, %c0_77] : memref<1x8x128xf32, #tpu.memory_space<vmem>>, vector<1x8x128xf32>
      %114 = vector.shape_cast %113 : vector<1x8x128xf32> to vector<8x128xf32>
      %c0_78 = arith.constant 0 : index
      %c0_79 = arith.constant 0 : index
      %115 = vector.load %arg13[%c0_78, %c0_79] : memref<24x128xf32, #tpu.memory_space<vmem>>, vector<8x128xf32>
      tpu.vector_store %arg13[%c0_78, %c0_79], %114 {strides = array<i32>} : memref<24x128xf32, #tpu.memory_space<vmem>>, vector<8x128xf32>,
    } else {
    }
    %c0 = arith.constant 0 : index
    %c0_3 = arith.constant 0 : index
    %c0_4 = arith.constant 0 : index
    %6 = vector.load %arg2[%c0, %c0_3, %c0_4] : memref<1x16x128xf32, #tpu.memory_space<vmem>>, vector<1x16x128xf32>
    %7 = vector.shape_cast %6 : vector<1x16x128xf32> to vector<16x128xf32>
    %c8 = arith.constant 8 : index
    %c0_5 = arith.constant 0 : index
    %8 = vector.load %arg13[%c8, %c0_5] : memref<24x128xf32, #tpu.memory_space<vmem>>, vector<16x128xf32>
    tpu.vector_store %arg13[%c8, %c0_5], %7 {strides = array<i32>} : memref<24x128xf32, #tpu.memory_space<vmem>>, vector<16x128xf32>,
    %cst = arith.constant 0.000000e+00 : f32
    %9 = vector.broadcast %cst : f32 to vector<20x128xf32>
    %c2 = arith.constant 2 : index
    %c0_6 = arith.constant 0 : index
    %10 = vector.load %arg13[%c2, %c0_6] : memref<24x128xf32, #tpu.memory_space<vmem>>, vector<20x128xf32>
    %c0_7 = arith.constant 0 : index
    %c0_8 = arith.constant 0 : index
    %c0_9 = arith.constant 0 : index
    %11 = vector.load %arg4[%c0_7, %c0_8, %c0_9] : memref<3x128x128xf32, #tpu.memory_space<vmem>>, vector<1x128x128xf32>
    %12 = vector.shape_cast %11 : vector<1x128x128xf32> to vector<128x128xf32>
    %cst_10 = arith.constant dense<0.000000e+00> : vector<20x128xf32>
    %13 = tpu.matmul %10, %12, %cst_10 {dimension_numbers = #tpu.dot_dimension_numbers<[1], [0], [0], [1], [0, 0, 1, 1], [], []>} : vector<20x128xf32>, vector<128x128xf32>, vector<20x128xf32> -> vector<20x128xf32>
    %14 = arith.addf %9, %13 : vector<20x128xf32>
    %c3 = arith.constant 3 : index
    %c0_11 = arith.constant 0 : index
    %15 = vector.load %arg13[%c3, %c0_11] : memref<24x128xf32, #tpu.memory_space<vmem>>, vector<20x128xf32>
    %c1 = arith.constant 1 : index
    %c0_12 = arith.constant 0 : index
    %c0_13 = arith.constant 0 : index
    %16 = vector.load %arg4[%c1, %c0_12, %c0_13] : memref<3x128x128xf32, #tpu.memory_space<vmem>>, vector<1x128x128xf32>
    %17 = vector.shape_cast %16 : vector<1x128x128xf32> to vector<128x128xf32>
    %cst_14 = arith.constant dense<0.000000e+00> : vector<20x128xf32>
    %18 = tpu.matmul %15, %17, %cst_14 {dimension_numbers = #tpu.dot_dimension_numbers<[1], [0], [0], [1], [0, 0, 1, 1], [], []>} : vector<20x128xf32>, vector<128x128xf32>, vector<20x128xf32> -> vector<20x128xf32>
    %19 = arith.addf %14, %18 : vector<20x128xf32>
    %c4 = arith.constant 4 : index
    %c0_15 = arith.constant 0 : index
    %20 = vector.load %arg13[%c4, %c0_15] : memref<24x128xf32, #tpu.memory_space<vmem>>, vector<20x128xf32>
    %c2_16 = arith.constant 2 : index
    %c0_17 = arith.constant 0 : index
    %c0_18 = arith.constant 0 : index
    %21 = vector.load %arg4[%c2_16, %c0_17, %c0_18] : memref<3x128x128xf32, #tpu.memory_space<vmem>>, vector<1x128x128xf32>
    %22 = vector.shape_cast %21 : vector<1x128x128xf32> to vector<128x128xf32>
    %cst_19 = arith.constant dense<0.000000e+00> : vector<20x128xf32>
    %23 = tpu.matmul %20, %22, %cst_19 {dimension_numbers = #tpu.dot_dimension_numbers<[1], [0], [0], [1], [0, 0, 1, 1], [], []>} : vector<20x128xf32>, vector<128x128xf32>, vector<20x128xf32> -> vector<20x128xf32>
    %24 = arith.addf %19, %23 : vector<20x128xf32>
    %c0_20 = arith.constant 0 : index
    %c0_21 = arith.constant 0 : index
    %25 = vector.load %arg5[%c0_20, %c0_21] : memref<1x128xf32, #tpu.memory_space<vmem>>, vector<1x128xf32>
    %26 = vector.broadcast %25 : vector<1x128xf32> to vector<20x128xf32>
    %27 = arith.addf %24, %26 : vector<20x128xf32>
    %cst_22 = arith.constant dense<0.000000e+00> : vector<20xf32>
    %28 = vector.multi_reduction <add>, %27, %cst_22 [1] : vector<20x128xf32> to vector<20xf32>
    %29 = vector.shape_cast %28 : vector<20xf32> to vector<20x1xf32>
    %30 = arith.mulf %27, %27 : vector<20x128xf32>
    %cst_23 = arith.constant dense<0.000000e+00> : vector<20xf32>
    %31 = vector.multi_reduction <add>, %30, %cst_23 [1] : vector<20x128xf32> to vector<20xf32>
    %32 = vector.shape_cast %31 : vector<20xf32> to vector<20x1xf32>
    %cst_24 = arith.constant 3.125000e-02 : f32
    %33 = vector.broadcast %cst_24 : f32 to vector<20x1xf32>
    %34 = arith.mulf %29, %33 : vector<20x1xf32>
    %cst_25 = arith.constant 3.125000e-02 : f32
    %35 = vector.broadcast %cst_25 : f32 to vector<20x1xf32>
    %36 = arith.mulf %32, %35 : vector<20x1xf32>
    %37 = arith.mulf %34, %34 : vector<20x1xf32>
    %38 = arith.subf %36, %37 : vector<20x1xf32>
    %cst_26 = arith.constant 0.000000e+00 : f32
    %39 = vector.broadcast %cst_26 : f32 to vector<20x1xf32>
    %40 = arith.maximumf %38, %39 : vector<20x1xf32>
    %41 = vector.broadcast %34 : vector<20x1xf32> to vector<20x128xf32>
    %42 = arith.subf %27, %41 : vector<20x128xf32>
    %cst_27 = arith.constant 9.99999993E-9 : f32
    %43 = vector.broadcast %cst_27 : f32 to vector<20x1xf32>
    %44 = arith.addf %40, %43 : vector<20x1xf32>
    %45 = math.rsqrt %44 : vector<20x1xf32>
    %46 = vector.broadcast %45 : vector<20x1xf32> to vector<20x128xf32>
    %47 = arith.mulf %42, %46 : vector<20x128xf32>
    %c0_28 = arith.constant 0 : index
    %c0_29 = arith.constant 0 : index
    %48 = vector.load %arg6[%c0_28, %c0_29] : memref<1x128xf32, #tpu.memory_space<vmem>>, vector<1x128xf32>
    %49 = vector.broadcast %48 : vector<1x128xf32> to vector<20x128xf32>
    %50 = arith.mulf %47, %49 : vector<20x128xf32>
    %c0_30 = arith.constant 0 : index
    %c0_31 = arith.constant 0 : index
    %51 = vector.load %arg7[%c0_30, %c0_31] : memref<1x128xf32, #tpu.memory_space<vmem>>, vector<1x128xf32>
    %52 = vector.broadcast %51 : vector<1x128xf32> to vector<20x128xf32>
    %53 = arith.addf %50, %52 : vector<20x128xf32>
    %cst_32 = arith.constant 0.000000e+00 : f32
    %54 = vector.broadcast %cst_32 : f32 to vector<20x128xf32>
    %55 = arith.maximumf %53, %54 : vector<20x128xf32>
    %c0_33 = arith.constant 0 : index
    %c0_34 = arith.constant 0 : index
    %56 = vector.load %arg14[%c0_33, %c0_34] : memref<20x128xf32, #tpu.memory_space<vmem>>, vector<20x128xf32>
    tpu.vector_store %arg14[%c0_33, %c0_34], %55 {strides = array<i32>} : memref<20x128xf32, #tpu.memory_space<vmem>>, vector<20x128xf32>,
    %c0_i32_35 = arith.constant 0 : i32
    %57 = arith.cmpi eq, %arg1, %c0_i32_35 : i32
    %58 = arith.extui %57 : i1 to i32
    %c0_i32_36 = arith.constant 0 : i32
    %59 = arith.cmpi ne, %58, %c0_i32_36 : i32
    scf.if %59 {
      %cst_75 = arith.constant 0.000000e+00 : f32
      %113 = vector.broadcast %cst_75 : f32 to vector<4x128xf32>
      %c0_76 = arith.constant 0 : index
      %c0_77 = arith.constant 0 : index
      %114 = vector.load %arg14[%c0_76, %c0_77] : memref<20x128xf32, #tpu.memory_space<vmem>>, vector<4x128xf32>
      tpu.vector_store %arg14[%c0_76, %c0_77], %113 {strides = array<i32>} : memref<20x128xf32, #tpu.memory_space<vmem>>, vector<4x128xf32>,
    } else {
    }
    %cst_37 = arith.constant 0.000000e+00 : f32
    %60 = vector.broadcast %cst_37 : f32 to vector<16x128xf32>
    %c0_38 = arith.constant 0 : index
    %c0_39 = arith.constant 0 : index
    %61 = vector.load %arg14[%c0_38, %c0_39] : memref<20x128xf32, #tpu.memory_space<vmem>>, vector<16x128xf32>
    %c0_40 = arith.constant 0 : index
    %c0_41 = arith.constant 0 : index
    %c0_42 = arith.constant 0 : index
    %62 = vector.load %arg8[%c0_40, %c0_41, %c0_42] : memref<3x128x128xf32, #tpu.memory_space<vmem>>, vector<1x128x128xf32>
    %63 = vector.shape_cast %62 : vector<1x128x128xf32> to vector<128x128xf32>
    %cst_43 = arith.constant dense<0.000000e+00> : vector<16x128xf32>
    %64 = tpu.matmul %61, %63, %cst_43 {dimension_numbers = #tpu.dot_dimension_numbers<[1], [0], [0], [1], [0, 0, 1, 1], [], []>} : vector<16x128xf32>, vector<128x128xf32>, vector<16x128xf32> -> vector<16x128xf32>
    %65 = arith.addf %60, %64 : vector<16x128xf32>
    %c2_44 = arith.constant 2 : index
    %c0_45 = arith.constant 0 : index
    %66 = vector.load %arg14[%c2_44, %c0_45] : memref<20x128xf32, #tpu.memory_space<vmem>>, vector<16x128xf32>
    %c1_46 = arith.constant 1 : index
    %c0_47 = arith.constant 0 : index
    %c0_48 = arith.constant 0 : index
    %67 = vector.load %arg8[%c1_46, %c0_47, %c0_48] : memref<3x128x128xf32, #tpu.memory_space<vmem>>, vector<1x128x128xf32>
    %68 = vector.shape_cast %67 : vector<1x128x128xf32> to vector<128x128xf32>
    %cst_49 = arith.constant dense<0.000000e+00> : vector<16x128xf32>
    %69 = tpu.matmul %66, %68, %cst_49 {dimension_numbers = #tpu.dot_dimension_numbers<[1], [0], [0], [1], [0, 0, 1, 1], [], []>} : vector<16x128xf32>, vector<128x128xf32>, vector<16x128xf32> -> vector<16x128xf32>
    %70 = arith.addf %65, %69 : vector<16x128xf32>
    %c4_50 = arith.constant 4 : index
    %c0_51 = arith.constant 0 : index
    %71 = vector.load %arg14[%c4_50, %c0_51] : memref<20x128xf32, #tpu.memory_space<vmem>>, vector<16x128xf32>
    %c2_52 = arith.constant 2 : index
    %c0_53 = arith.constant 0 : index
    %c0_54 = arith.constant 0 : index
    %72 = vector.load %arg8[%c2_52, %c0_53, %c0_54] : memref<3x128x128xf32, #tpu.memory_space<vmem>>, vector<1x128x128xf32>
    %73 = vector.shape_cast %72 : vector<1x128x128xf32> to vector<128x128xf32>
    %cst_55 = arith.constant dense<0.000000e+00> : vector<16x128xf32>
    %74 = tpu.matmul %71, %73, %cst_55 {dimension_numbers = #tpu.dot_dimension_numbers<[1], [0], [0], [1], [0, 0, 1, 1], [], []>} : vector<16x128xf32>, vector<128x128xf32>, vector<16x128xf32> -> vector<16x128xf32>
    %75 = arith.addf %70, %74 : vector<16x128xf32>
    %c0_56 = arith.constant 0 : index
    %c0_57 = arith.constant 0 : index
    %76 = vector.load %arg9[%c0_56, %c0_57] : memref<1x128xf32, #tpu.memory_space<vmem>>, vector<1x128xf32>
    %77 = vector.broadcast %76 : vector<1x128xf32> to vector<16x128xf32>
    %78 = arith.addf %75, %77 : vector<16x128xf32>
    %cst_58 = arith.constant dense<0.000000e+00> : vector<16xf32>
    %79 = vector.multi_reduction <add>, %78, %cst_58 [1] : vector<16x128xf32> to vector<16xf32>
    %80 = vector.shape_cast %79 : vector<16xf32> to vector<16x1xf32>
    %81 = arith.mulf %78, %78 : vector<16x128xf32>
    %cst_59 = arith.constant dense<0.000000e+00> : vector<16xf32>
    %82 = vector.multi_reduction <add>, %81, %cst_59 [1] : vector<16x128xf32> to vector<16xf32>
    %83 = vector.shape_cast %82 : vector<16xf32> to vector<16x1xf32>
    %cst_60 = arith.constant 3.125000e-02 : f32
    %84 = vector.broadcast %cst_60 : f32 to vector<16x1xf32>
    %85 = arith.mulf %80, %84 : vector<16x1xf32>
    %cst_61 = arith.constant 3.125000e-02 : f32
    %86 = vector.broadcast %cst_61 : f32 to vector<16x1xf32>
    %87 = arith.mulf %83, %86 : vector<16x1xf32>
    %88 = arith.mulf %85, %85 : vector<16x1xf32>
    %89 = arith.subf %87, %88 : vector<16x1xf32>
    %cst_62 = arith.constant 0.000000e+00 : f32
    %90 = vector.broadcast %cst_62 : f32 to vector<16x1xf32>
    %91 = arith.maximumf %89, %90 : vector<16x1xf32>
    %92 = vector.broadcast %85 : vector<16x1xf32> to vector<16x128xf32>
    %93 = arith.subf %78, %92 : vector<16x128xf32>
    %cst_63 = arith.constant 9.99999993E-9 : f32
    %94 = vector.broadcast %cst_63 : f32 to vector<16x1xf32>
    %95 = arith.addf %91, %94 : vector<16x1xf32>
    %96 = math.rsqrt %95 : vector<16x1xf32>
    %97 = vector.broadcast %96 : vector<16x1xf32> to vector<16x128xf32>
    %98 = arith.mulf %93, %97 : vector<16x128xf32>
    %c0_64 = arith.constant 0 : index
    %c0_65 = arith.constant 0 : index
    %99 = vector.load %arg10[%c0_64, %c0_65] : memref<1x128xf32, #tpu.memory_space<vmem>>, vector<1x128xf32>
    %100 = vector.broadcast %99 : vector<1x128xf32> to vector<16x128xf32>
    %101 = arith.mulf %98, %100 : vector<16x128xf32>
    %c0_66 = arith.constant 0 : index
    %c0_67 = arith.constant 0 : index
    %102 = vector.load %arg11[%c0_66, %c0_67] : memref<1x128xf32, #tpu.memory_space<vmem>>, vector<1x128xf32>
    %103 = vector.broadcast %102 : vector<1x128xf32> to vector<16x128xf32>
    %104 = arith.addf %101, %103 : vector<16x128xf32>
    %cst_68 = arith.constant 0.000000e+00 : f32
    %105 = vector.broadcast %cst_68 : f32 to vector<16x128xf32>
    %106 = arith.maximumf %104, %105 : vector<16x128xf32>
    %c0_69 = arith.constant 0 : index
    %c0_70 = arith.constant 0 : index
    %c0_71 = arith.constant 0 : index
    %107 = vector.load %arg2[%c0_69, %c0_70, %c0_71] : memref<1x16x128xf32, #tpu.memory_space<vmem>>, vector<1x16x128xf32>
    %108 = vector.shape_cast %107 : vector<1x16x128xf32> to vector<16x128xf32>
    %109 = arith.addf %106, %108 : vector<16x128xf32>
    %c0_72 = arith.constant 0 : index
    %c0_73 = arith.constant 0 : index
    %c0_74 = arith.constant 0 : index
    %110 = vector.load %arg12[%c0_72, %c0_73, %c0_74] : memref<1x16x128xf32, #tpu.memory_space<vmem>>, vector<1x16x128xf32>
    %111 = vector.shape_cast %110 : vector<1x16x128xf32> to vector<16x128xf32>
    %112 = vector.shape_cast %109 : vector<16x128xf32> to vector<1x16x128xf32>
    tpu.vector_store %arg12[%c0_72, %c0_73, %c0_74], %112 {strides = array<i32>} : memref<1x16x128xf32, #tpu.memory_space<vmem>>, vector<1x16x128xf32>,
    return
  }
  func.func @transform_0(%arg0: i32, %arg1: i32) -> (i32, i32, i32) {
    %c0_i32 = arith.constant 0 : i32
    %c0_i32_0 = arith.constant 0 : i32
    return %arg0, %arg1, %c0_i32 : i32, i32, i32
  }
  func.func @transform_1(%arg0: i32, %arg1: i32) -> (i32, i32, i32) {
    %c2_i32 = arith.constant 2 : i32
    %0 = arith.muli %arg1, %c2_i32 : i32
    %c1_i32 = arith.constant 1 : i32
    %1 = arith.subi %0, %c1_i32 : i32
    %c0_i32 = arith.constant 0 : i32
    %2 = arith.maxsi %1, %c0_i32 : i32
    %c0_i32_0 = arith.constant 0 : i32
    %c0_i32_1 = arith.constant 0 : i32
    return %arg0, %2, %c0_i32_0 : i32, i32, i32
  }
  func.func @transform_2(%arg0: i32, %arg1: i32) -> (i32, i32, i32) {
    %c0_i32 = arith.constant 0 : i32
    %c0_i32_0 = arith.constant 0 : i32
    %c0_i32_1 = arith.constant 0 : i32
    %c0_i32_2 = arith.constant 0 : i32
    return %c0_i32, %c0_i32_0, %c0_i32_1 : i32, i32, i32
  }
  func.func @transform_3(%arg0: i32, %arg1: i32) -> (i32, i32) {
    %c0_i32 = arith.constant 0 : i32
    %c0_i32_0 = arith.constant 0 : i32
    %c0_i32_1 = arith.constant 0 : i32
    return %c0_i32, %c0_i32_0 : i32, i32
  }
  func.func @transform_4(%arg0: i32, %arg1: i32) -> (i32, i32) {
    %c0_i32 = arith.constant 0 : i32
    %c0_i32_0 = arith.constant 0 : i32
    %c0_i32_1 = arith.constant 0 : i32
    return %c0_i32, %c0_i32_0 : i32, i32
  }
  func.func @transform_5(%arg0: i32, %arg1: i32) -> (i32, i32) {
    %c0_i32 = arith.constant 0 : i32
    %c0_i32_0 = arith.constant 0 : i32
    %c0_i32_1 = arith.constant 0 : i32
    return %c0_i32, %c0_i32_0 : i32, i32
  }
  func.func @transform_6(%arg0: i32, %arg1: i32) -> (i32, i32, i32) {
    %c0_i32 = arith.constant 0 : i32
    %c0_i32_0 = arith.constant 0 : i32
    %c0_i32_1 = arith.constant 0 : i32
    %c0_i32_2 = arith.constant 0 : i32
    return %c0_i32, %c0_i32_0, %c0_i32_1 : i32, i32, i32
  }
  func.func @transform_7(%arg0: i32, %arg1: i32) -> (i32, i32) {
    %c0_i32 = arith.constant 0 : i32
    %c0_i32_0 = arith.constant 0 : i32
    %c0_i32_1 = arith.constant 0 : i32
    return %c0_i32, %c0_i32_0 : i32, i32
  }
  func.func @transform_8(%arg0: i32, %arg1: i32) -> (i32, i32) {
    %c0_i32 = arith.constant 0 : i32
    %c0_i32_0 = arith.constant 0 : i32
    %c0_i32_1 = arith.constant 0 : i32
    return %c0_i32, %c0_i32_0 : i32, i32
  }
  func.func @transform_9(%arg0: i32, %arg1: i32) -> (i32, i32) {
    %c0_i32 = arith.constant 0 : i32
    %c0_i32_0 = arith.constant 0 : i32
    %c0_i32_1 = arith.constant 0 : i32
    return %c0_i32, %c0_i32_0 : i32, i32
  }
  func.func @transform_10(%arg0: i32, %arg1: i32) -> (i32, i32, i32) {
    %c0_i32 = arith.constant 0 : i32
    %c0_i32_0 = arith.constant 0 : i32
    return %arg0, %arg1, %c0_i32 : i32, i32, i32
  }
}

</mosaic_0001>

<llo_original>
// kernel: tpu_custom_call.1
$region0: #{tpu_custom_call.1}
  #allocation0 [shape = 'u32[]', space=smem, size = 0x4, offset = 0x4, fixed_abs, tag = 'smem constant byte address 0x4 - core index']
  #allocation1 [shape = 'u32[144,128]{1,0:T(1,128)}', space=vmem, size = 0x12000, scoped, tag = 'internal scratch']
  #allocation2 [shape = 'f32[24,128]{1,0:T(8,128)}', space=vmem, size = 0x3000, scoped, tag = 'scratch operand']
  #allocation3 [shape = 'f32[20,128]{1,0:T(8,128)}', space=vmem, size = 0x3000, scoped, tag = 'scratch operand']
  %s0 = inlined_call_operand.hbm [shape: f32[2,48,128], index: 0, kind: input, shape index: {}]
  %s1 = inlined_call_operand.hbm [shape: f32[2,48,128], index: 1, kind: input, shape index: {}]
  %s2 = inlined_call_operand.hbm [shape: f32[3,128,128], index: 2, kind: input, shape index: {}]
  %s3 = inlined_call_operand.vmem [shape: f32[1,128], index: 3, kind: input, shape index: {}]
  %s4 = inlined_call_operand.vmem [shape: f32[1,128], index: 4, kind: input, shape index: {}]
  %s5 = inlined_call_operand.vmem [shape: f32[1,128], index: 5, kind: input, shape index: {}]
  %s6 = inlined_call_operand.hbm [shape: f32[3,128,128], index: 6, kind: input, shape index: {}]
  %s7 = inlined_call_operand.vmem [shape: f32[1,128], index: 7, kind: input, shape index: {}]
  %s8 = inlined_call_operand.vmem [shape: f32[1,128], index: 8, kind: input, shape index: {}]
  %s9 = inlined_call_operand.vmem [shape: f32[1,128], index: 9, kind: input, shape index: {}]
  %s10 = inlined_call_operand.hbm [shape: f32[2,48,128], index: 10, kind: output, shape index: {}]
  %s11 = sld [smem:[#allocation0]]
  $region101: #{tpu_custom_call.1} parent=0
    _
  %s13 = ssub.s32 1, %s11
  %s14 = scalar_select 0, %s13, %s11
  $region1: #{tpu_custom_call.1} parent=0
    #allocation4 [shape = 'u8[16384]{0}', space=vmem, size = 0x4000, scoped, tag = 'input window, operand 0']
    #allocation5 [shape = 's32[2]{0}', space=sflag, size = 0x8, scoped, tag = 'scoped memory for tpu_custom_call.1']
    #allocation6 [shape = 's32[2]{0}', space=sflag, size = 0x8, scoped, tag = 'scoped memory for tpu_custom_call.1']
    #allocation7 [shape = 'u8[8192]{0}', space=vmem, size = 0x2000, scoped, tag = 'input window, operand 1']
    #allocation8 [shape = 's32[2]{0}', space=sflag, size = 0x8, scoped, tag = 'scoped memory for tpu_custom_call.1']
    #allocation9 [shape = 'u8[196608]{0}', space=vmem, size = 0x30000, scoped, tag = 'input window, operand 2, single buffered']
    #allocation10 [shape = 'u8[196608]{0}', space=vmem, size = 0x30000, scoped, tag = 'input window, operand 6, single buffered']
    #allocation11 [shape = 's32[1]{0}', space=sflag, size = 0x4, scoped, tag = 'scoped memory for tpu_custom_call.1']
    #allocation12 [shape = 'u8[16384]{0}', space=vmem, size = 0x4000, scoped, tag = 'output window, operand 0']
    %15 = vsyncpa [#allocation5], 0
    %s16 = scalar_lea.sflag [#allocation5], 1
    %17 = vsyncpa %s16, 0
    %18 = vsyncpa [#allocation8], 0
    %s19 = scalar_lea.sflag [#allocation8], 1
    %20 = vsyncpa %s19, 0
    %21 = vsyncpa [#allocation11], 0
    %22 = vsyncpa [#allocation6], 0
    %s23 = scalar_lea.sflag [#allocation6], 1
    %24 = vsyncpa %s23, 0
    loop: start=0, step=1, limit=8
    $region2: #{tpu_custom_call.1} parent=1 // loop_pre_header
      _
    $region3: #{tpu_custom_call.1} parent=1 // loop_header
      %s26 = sphi 0, %s30
      %p27 = scmp.ge.s32.totalorder %s26, 8
      %s33 = sphi 0, %s45
      %s34 = sphi 0, %s41
      %s35 = sphi 0, %s33
      %s36 = sphi 0, %s34
      %s37 = sphi 0, %s35
      %s38 = sphi 0, %s36
      %s50 = sphi 0, %s52
      %s53 = sphi 0, %s50
      %s54 = sphi 0, %s53
      %s70 = sphi 0, %s54
      %s86 = sphi 0, %s88
      %s89 = sphi 0, %s86
      %s90 = sphi 0, %s89
      %s106 = sphi 0, %s90
      %s110 = sphi 0, %s110
      %s112 = sphi 0, %s110
      %s113 = sphi 0, %s112
      %s127 = sphi 0, %s113
      %s131 = sphi 0, %s131
      %s133 = sphi 0, %s131
      %s134 = sphi 0, %s133
      %s148 = sphi 0, %s134
      %s152 = sphi 0, %s152
      %s154 = sphi 0, %s152
      %s155 = sphi 0, %s154
      %s169 = sphi 0, %s155
      %s173 = sphi 0, %s173
      %s175 = sphi 0, %s173
      %s176 = sphi 0, %s175
      %s190 = sphi 0, %s176
      %s194 = sphi 0, %s194
      %s196 = sphi 0, %s194
      %s197 = sphi 0, %s196
      %s211 = sphi 0, %s197
      %s215 = sphi 0, %s215
      %s217 = sphi 0, %s215
      %s218 = sphi 0, %s217
      %s232 = sphi 0, %s218
      %s236 = sphi 0, %s236
      %s238 = sphi 0, %s236
      %s239 = sphi 0, %s238
      %s253 = sphi 0, %s239
      %s257 = sphi 0, %s257
      %s259 = sphi 0, %s257
      %s260 = sphi 0, %s259
      %s274 = sphi 0, %s260
      %s282 = sphi 0, %s284
      %s285 = sphi 0, %s282
      %s286 = sphi 0, %s285
      %s302 = sphi 0, %s286
    $region4: #{tpu_custom_call.1} parent=1 // loop_header_branch
      %29 = sbr.rel (%p27) target = $region8
    $region5: #{tpu_custom_call.1} parent=1 // loop_body
      %s31 = ssub.s32 %s26, 1
      %s32 = ssub.s32 %s26, 2
      %s39 = sadd.s32 1, %s34
      %p40 = scmp.ge.s32.totalorder %s39, 3
      %s41 = scalar_select %p40, 0, %s39
      %s42 = sadd.s32 1, %s33
      %s43 = scalar_select %p40, %s42, %s33
      %p44 = scmp.ge.s32.totalorder %s43, 2
      %s45 = scalar_select %p44, 0, %s43
      %s46 = ssub.s32 %s33, %s45
      %s47 = ssub.s32 %s34, %s41
      %s48 = sor.u32 %s46, %s47
      %p49 = scmp.eq.s32.totalorder %s48, 0
      %s51 = sadd.s32 %s50, 1
      %s52 = scalar_select %p49, %s50, %s51
      %p55 = pneg %p49
      %p56 = scmp.eq.s32.totalorder %s26, 5
      %p57 = por %p55, %p56
      %p58 = scmp.ne.s32.totalorder %s50, %s53
      %p59 = scmp.eq.s32.totalorder %s26, 0
      %p60 = por %p58, %p59
      %p61 = scmp.ne.s32.totalorder %s50, %s53
      %p62 = scmp.eq.s32.totalorder %s31, 5
      %p63 = por %p61, %p62
      %p64 = scmp.ne.s32.totalorder %s53, %s54
      %p65 = scmp.eq.s32.totalorder %s31, 0
      %p66 = por %p64, %p65
      %p67 = scmp.ne.s32.totalorder %s53, %s54
      %p68 = scmp.eq.s32.totalorder %s32, 5
      %p69 = por %p67, %p68
      %p71 = scmp.ne.s32.totalorder %s54, %s70
      %p72 = scmp.eq.s32.totalorder %s32, 0
      %p73 = por %p71, %p72
      %s74 = smul.u32 %s34, 2
      %s75 = ssub.s32 %s74, 1
      %p76 = scmp.gt.s32.totalorder %s75, 0
      %s77 = scalar_select %p76, %s75, 0
      %s78 = smul.u32 %s41, 2
      %s79 = ssub.s32 %s78, 1
      %p80 = scmp.gt.s32.totalorder %s79, 0
      %s81 = scalar_select %p80, %s79, 0
      %s82 = ssub.s32 %s33, %s45
      %s83 = ssub.s32 %s77, %s81
      %s84 = sor.u32 %s82, %s83
      %p85 = scmp.eq.s32.totalorder %s84, 0
      %s87 = sadd.s32 %s86, 1
      %s88 = scalar_select %p85, %s86, %s87
      %p91 = pneg %p85
      %p92 = scmp.eq.s32.totalorder %s26, 5
      %p93 = por %p91, %p92
      %p94 = scmp.ne.s32.totalorder %s86, %s89
      %p95 = scmp.eq.s32.totalorder %s26, 0
      %p96 = por %p94, %p95
      %p97 = scmp.ne.s32.totalorder %s86, %s89
      %p98 = scmp.eq.s32.totalorder %s31, 5
      %p99 = por %p97, %p98
      %p100 = scmp.ne.s32.totalorder %s89, %s90
      %p101 = scmp.eq.s32.totalorder %s31, 0
      %p102 = por %p100, %p101
      %p103 = scmp.ne.s32.totalorder %s89, %s90
      %p104 = scmp.eq.s32.totalorder %s32, 5
      %p105 = por %p103, %p104
      %p107 = scmp.ne.s32.totalorder %s90, %s106
      %p108 = scmp.eq.s32.totalorder %s32, 0
      %p109 = por %p107, %p108
      %s111 = sadd.s32 %s110, 1
      %p114 = scmp.eq.s32.totalorder %s26, 5
      %p115 = scmp.ne.s32.totalorder %s110, %s112
      %p116 = scmp.eq.s32.totalorder %s26, 0
      %p117 = por %p115, %p116
      %p118 = scmp.ne.s32.totalorder %s110, %s112
      %p119 = scmp.eq.s32.totalorder %s31, 5
      %p120 = por %p118, %p119
      %p121 = scmp.ne.s32.totalorder %s112, %s113
      %p122 = scmp.eq.s32.totalorder %s31, 0
      %p123 = por %p121, %p122
      %p124 = scmp.ne.s32.totalorder %s112, %s113
      %p125 = scmp.eq.s32.totalorder %s32, 5
      %p126 = por %p124, %p125
      %p128 = scmp.ne.s32.totalorder %s113, %s127
      %p129 = scmp.eq.s32.totalorder %s32, 0
      %p130 = por %p128, %p129
      %s132 = sadd.s32 %s131, 1
      %p135 = scmp.eq.s32.totalorder %s26, 5
      %p136 = scmp.ne.s32.totalorder %s131, %s133
      %p137 = scmp.eq.s32.totalorder %s26, 0
      %p138 = por %p136, %p137
      %p139 = scmp.ne.s32.totalorder %s131, %s133
      %p140 = scmp.eq.s32.totalorder %s31, 5
      %p141 = por %p139, %p140
      %p142 = scmp.ne.s32.totalorder %s133, %s134
      %p143 = scmp.eq.s32.totalorder %s31, 0
      %p144 = por %p142, %p143
      %p145 = scmp.ne.s32.totalorder %s133, %s134
      %p146 = scmp.eq.s32.totalorder %s32, 5
      %p147 = por %p145, %p146
      %p149 = scmp.ne.s32.totalorder %s134, %s148
      %p150 = scmp.eq.s32.totalorder %s32, 0
      %p151 = por %p149, %p150
      %s153 = sadd.s32 %s152, 1
      %p156 = scmp.eq.s32.totalorder %s26, 5
      %p157 = scmp.ne.s32.totalorder %s152, %s154
      %p158 = scmp.eq.s32.totalorder %s26, 0
      %p159 = por %p157, %p158
      %p160 = scmp.ne.s32.totalorder %s152, %s154
      %p161 = scmp.eq.s32.totalorder %s31, 5
      %p162 = por %p160, %p161
      %p163 = scmp.ne.s32.totalorder %s154, %s155
      %p164 = scmp.eq.s32.totalorder %s31, 0
      %p165 = por %p163, %p164
      %p166 = scmp.ne.s32.totalorder %s154, %s155
      %p167 = scmp.eq.s32.totalorder %s32, 5
      %p168 = por %p166, %p167
      %p170 = scmp.ne.s32.totalorder %s155, %s169
      %p171 = scmp.eq.s32.totalorder %s32, 0
      %p172 = por %p170, %p171
      %s174 = sadd.s32 %s173, 1
      %p177 = scmp.eq.s32.totalorder %s26, 5
      %p178 = scmp.ne.s32.totalorder %s173, %s175
      %p179 = scmp.eq.s32.totalorder %s26, 0
      %p180 = por %p178, %p179
      %p181 = scmp.ne.s32.totalorder %s173, %s175
      %p182 = scmp.eq.s32.totalorder %s31, 5
      %p183 = por %p181, %p182
      %p184 = scmp.ne.s32.totalorder %s175, %s176
      %p185 = scmp.eq.s32.totalorder %s31, 0
      %p186 = por %p184, %p185
      %p187 = scmp.ne.s32.totalorder %s175, %s176
      %p188 = scmp.eq.s32.totalorder %s32, 5
      %p189 = por %p187, %p188
      %p191 = scmp.ne.s32.totalorder %s176, %s190
      %p192 = scmp.eq.s32.totalorder %s32, 0
      %p193 = por %p191, %p192
      %s195 = sadd.s32 %s194, 1
      %p198 = scmp.eq.s32.totalorder %s26, 5
      %p199 = scmp.ne.s32.totalorder %s194, %s196
      %p200 = scmp.eq.s32.totalorder %s26, 0
      %p201 = por %p199, %p200
      %p202 = scmp.ne.s32.totalorder %s194, %s196
      %p203 = scmp.eq.s32.totalorder %s31, 5
      %p204 = por %p202, %p203
      %p205 = scmp.ne.s32.totalorder %s196, %s197
      %p206 = scmp.eq.s32.totalorder %s31, 0
      %p207 = por %p205, %p206
      %p208 = scmp.ne.s32.totalorder %s196, %s197
      %p209 = scmp.eq.s32.totalorder %s32, 5
      %p210 = por %p208, %p209
      %p212 = scmp.ne.s32.totalorder %s197, %s211
      %p213 = scmp.eq.s32.totalorder %s32, 0
      %p214 = por %p212, %p213
      %s216 = sadd.s32 %s215, 1
      %p219 = scmp.eq.s32.totalorder %s26, 5
      %p220 = scmp.ne.s32.totalorder %s215, %s217
      %p221 = scmp.eq.s32.totalorder %s26, 0
      %p222 = por %p220, %p221
      %p223 = scmp.ne.s32.totalorder %s215, %s217
      %p224 = scmp.eq.s32.totalorder %s31, 5
      %p225 = por %p223, %p224
      %p226 = scmp.ne.s32.totalorder %s217, %s218
      %p227 = scmp.eq.s32.totalorder %s31, 0
      %p228 = por %p226, %p227
      %p229 = scmp.ne.s32.totalorder %s217, %s218
      %p230 = scmp.eq.s32.totalorder %s32, 5
      %p231 = por %p229, %p230
      %p233 = scmp.ne.s32.totalorder %s218, %s232
      %p234 = scmp.eq.s32.totalorder %s32, 0
      %p235 = por %p233, %p234
      %s237 = sadd.s32 %s236, 1
      %p240 = scmp.eq.s32.totalorder %s26, 5
      %p241 = scmp.ne.s32.totalorder %s236, %s238
      %p242 = scmp.eq.s32.totalorder %s26, 0
      %p243 = por %p241, %p242
      %p244 = scmp.ne.s32.totalorder %s236, %s238
      %p245 = scmp.eq.s32.totalorder %s31, 5
      %p246 = por %p244, %p245
      %p247 = scmp.ne.s32.totalorder %s238, %s239
      %p248 = scmp.eq.s32.totalorder %s31, 0
      %p249 = por %p247, %p248
      %p250 = scmp.ne.s32.totalorder %s238, %s239
      %p251 = scmp.eq.s32.totalorder %s32, 5
      %p252 = por %p250, %p251
      %p254 = scmp.ne.s32.totalorder %s239, %s253
      %p255 = scmp.eq.s32.totalorder %s32, 0
      %p256 = por %p254, %p255
      %s258 = sadd.s32 %s257, 1
      %p261 = scmp.eq.s32.totalorder %s26, 5
      %p262 = scmp.ne.s32.totalorder %s257, %s259
      %p263 = scmp.eq.s32.totalorder %s26, 0
      %p264 = por %p262, %p263
      %p265 = scmp.ne.s32.totalorder %s257, %s259
      %p266 = scmp.eq.s32.totalorder %s31, 5
      %p267 = por %p265, %p266
      %p268 = scmp.ne.s32.totalorder %s259, %s260
      %p269 = scmp.eq.s32.totalorder %s31, 0
      %p270 = por %p268, %p269
      %p271 = scmp.ne.s32.totalorder %s259, %s260
      %p272 = scmp.eq.s32.totalorder %s32, 5
      %p273 = por %p271, %p272
      %p275 = scmp.ne.s32.totalorder %s260, %s274
      %p276 = scmp.eq.s32.totalorder %s32, 0
      %p277 = por %p275, %p276
      %s278 = ssub.s32 %s33, %s45
      %s279 = ssub.s32 %s34, %s41
      %s280 = sor.u32 %s278, %s279
      %p281 = scmp.eq.s32.totalorder %s280, 0
      %s283 = sadd.s32 %s282, 1
      %s284 = scalar_select %p281, %s282, %s283
      %p287 = pneg %p281
      %p288 = scmp.eq.s32.totalorder %s26, 5
      %p289 = por %p287, %p288
      %p290 = scmp.ne.s32.totalorder %s282, %s285
      %p291 = scmp.eq.s32.totalorder %s26, 0
      %p292 = por %p290, %p291
      %p293 = scmp.ne.s32.totalorder %s282, %s285
      %p294 = scmp.eq.s32.totalorder %s31, 5
      %p295 = por %p293, %p294
      %p296 = scmp.ne.s32.totalorder %s285, %s286
      %p297 = scmp.eq.s32.totalorder %s31, 0
      %p298 = por %p296, %p297
      %p299 = scmp.ne.s32.totalorder %s285, %s286
      %p300 = scmp.eq.s32.totalorder %s32, 5
      %p301 = por %p299, %p300
      %p303 = scmp.ne.s32.totalorder %s286, %s302
      %p304 = scmp.eq.s32.totalorder %s32, 0
      %p305 = por %p303, %p304
      %p306 = scmp.le.s32.totalorder 1, %s26
      %p307 = scmp.lt.s32.totalorder %s26, 7
      %p308 = pnand %p306, %p307
      %p309 = pneg %p308
      // Predicated region
      $region9: #{tpu_custom_call.1} parent=5 // pred_check
        _
      $region10: #{tpu_custom_call.1} parent=5 // pred_check_branch
        %311 = sbr.rel (%p308) target = $region12
      $region11: #{tpu_custom_call.1} parent=5 // pred_region
        %s312 = ssub.s32 %s26, 1
        // Predicated region
        $region13: #{tpu_custom_call.1} parent=11 // pred_check
          %p313 = pneg %p123
        $region14: #{tpu_custom_call.1} parent=11 // pred_check_branch
          %315 = sbr.rel (%p313) target = $region16
        $region15: #{tpu_custom_call.1} parent=11 // pred_region
          %s317 = ssub.s32 6144, 6144
          %318 = vsyncadd [#allocation8], %s317
          %s319 = sshll.u32 [#allocation9], 4
          %s320 = int_to_ptr.vmem [resolvable:$true] %s319
          %325 = dma.hbm_to_vmem [thread:$0]  %s2, 6144, %s320, [#allocation8], 128, 128, 8
        $region16: #{tpu_custom_call.1} parent=11 // pred_fallthru
          _
        // Predicated region
        $region17: #{tpu_custom_call.1} parent=11 // pred_check
          %p326 = pneg %p144
        $region18: #{tpu_custom_call.1} parent=11 // pred_check_branch
          %328 = sbr.rel (%p326) target = $region20
        $region19: #{tpu_custom_call.1} parent=11 // pred_region
          _
        $region20: #{tpu_custom_call.1} parent=11 // pred_fallthru
          _
        // Predicated region
        $region21: #{tpu_custom_call.1} parent=11 // pred_check
          %p329 = pneg %p165
        $region22: #{tpu_custom_call.1} parent=11 // pred_check_branch
          %331 = sbr.rel (%p329) target = $region24
        $region23: #{tpu_custom_call.1} parent=11 // pred_region
          _
        $region24: #{tpu_custom_call.1} parent=11 // pred_fallthru
          _
        // Predicated region
        $region25: #{tpu_custom_call.1} parent=11 // pred_check
          %p332 = pneg %p186
        $region26: #{tpu_custom_call.1} parent=11 // pred_check_branch
          %334 = sbr.rel (%p332) target = $region28
        $region27: #{tpu_custom_call.1} parent=11 // pred_region
          _
        $region28: #{tpu_custom_call.1} parent=11 // pred_fallthru
          _
        // Predicated region
        $region29: #{tpu_custom_call.1} parent=11 // pred_check
          %p335 = pneg %p207
        $region30: #{tpu_custom_call.1} parent=11 // pred_check_branch
          %337 = sbr.rel (%p335) target = $region32
        $region31: #{tpu_custom_call.1} parent=11 // pred_region
          %s339 = ssub.s32 6144, 6144
          %340 = vsyncadd [#allocation11], %s339
          %s341 = sshll.u32 [#allocation10], 4
          %s342 = int_to_ptr.vmem [resolvable:$true] %s341
          %347 = dma.hbm_to_vmem [thread:$0]  %s6, 6144, %s342, [#allocation11], 128, 128, 8
        $region32: #{tpu_custom_call.1} parent=11 // pred_fallthru
          _
        // Predicated region
        $region33: #{tpu_custom_call.1} parent=11 // pred_check
          %p348 = pneg %p228
        $region34: #{tpu_custom_call.1} parent=11 // pred_check_branch
          %350 = sbr.rel (%p348) target = $region36
        $region35: #{tpu_custom_call.1} parent=11 // pred_region
          _
        $region36: #{tpu_custom_call.1} parent=11 // pred_fallthru
          _
        // Predicated region
        $region37: #{tpu_custom_call.1} parent=11 // pred_check
          %p351 = pneg %p249
        $region38: #{tpu_custom_call.1} parent=11 // pred_check_branch
          %353 = sbr.rel (%p351) target = $region40
        $region39: #{tpu_custom_call.1} parent=11 // pred_region
          _
        $region40: #{tpu_custom_call.1} parent=11 // pred_fallthru
          _
        // Predicated region
        $region41: #{tpu_custom_call.1} parent=11 // pred_check
          %p354 = pneg %p270
        $region42: #{tpu_custom_call.1} parent=11 // pred_check_branch
          %356 = sbr.rel (%p354) target = $region44
        $region43: #{tpu_custom_call.1} parent=11 // pred_region
          _
        $region44: #{tpu_custom_call.1} parent=11 // pred_fallthru
          _
      $region12: #{tpu_custom_call.1} parent=5 // pred_fallthru
        _
      %p357 = scmp.lt.s32.totalorder %s26, 6
      // Predicated region
      $region45: #{tpu_custom_call.1} parent=5 // pred_check
        %p358 = pneg %p357
      $region46: #{tpu_custom_call.1} parent=5 // pred_check_branch
        %360 = sbr.rel (%p358) target = $region48
      $region47: #{tpu_custom_call.1} parent=5 // pred_region
        // Predicated region
        $region49: #{tpu_custom_call.1} parent=47 // pred_check
          %p361 = pneg %p60
        $region50: #{tpu_custom_call.1} parent=47 // pred_check_branch
          %363 = sbr.rel (%p361) target = $region52
        $region51: #{tpu_custom_call.1} parent=47 // pred_region
          %s364 = sand.u32 %s50, 1
          %s365 = scalar_lea.sflag [#allocation5], %s364
          %s366 = sand.u32 %s50, 1
          %s367 = smul.addr %s366, 16
          %s368 = scalar_lea.vmem [#allocation4], %s367
          %s369 = smul.u32 2, %s34
          %s371 = ssub.s32 256, 256
          %372 = vsyncadd %s365, %s371
          %s373 = smul.addr %s33, 6
          %s374 = sadd.s32 %s369, %s373
          %s375 = smul.addr %s374, 128
          %s376 = scalar_lea.hbm %s0, %s375
          %s377 = sshll.u32 %s368, 4
          %s378 = int_to_ptr.vmem [resolvable:$true] %s377
          %383 = dma.hbm_to_vmem [thread:$0]  %s376, 256, %s378, %s365, 128, 128, 8
        $region52: #{tpu_custom_call.1} parent=47 // pred_fallthru
          _
        // Predicated region
        $region53: #{tpu_custom_call.1} parent=47 // pred_check
          %p384 = pneg %p96
        $region54: #{tpu_custom_call.1} parent=47 // pred_check_branch
          %386 = sbr.rel (%p384) target = $region56
        $region55: #{tpu_custom_call.1} parent=47 // pred_region
          %s387 = sand.u32 %s26, 1
          %s388 = scalar_lea.sflag [#allocation8], %s387
          %s389 = sand.u32 %s86, 1
          %s390 = smul.addr %s389, 8
          %s391 = scalar_lea.vmem [#allocation7], %s390
          %s392 = smul.u32 %s34, 2
          %s393 = ssub.s32 %s392, 1
          %p394 = scmp.gt.s32.totalorder %s393, 0
          %s395 = scalar_select %p394, %s393, 0
          %s397 = ssub.s32 128, 128
          %398 = vsyncadd %s388, %s397
          %s399 = smul.addr %s33, 6
          %s400 = sadd.s32 %s395, %s399
          %s401 = smul.addr %s400, 128
          %s402 = scalar_lea.hbm %s1, %s401
          %s404 = sshll.u32 %s391, 4
          %s405 = int_to_ptr.vmem [resolvable:$true] %s404
          %407 = dma.hbm_to_vmem [thread:$0]  %s402, 128, %s405, %s388
        $region56: #{tpu_custom_call.1} parent=47 // pred_fallthru
          _
      $region48: #{tpu_custom_call.1} parent=5 // pred_fallthru
        _
      %p408 = scmp.le.s32.totalorder 1, %s26
      %p409 = scmp.lt.s32.totalorder %s26, 7
      %p410 = pnand %p408, %p409
      %p411 = pneg %p410
      // Predicated region
      $region57: #{tpu_custom_call.1} parent=5 // pred_check
        _
      $region58: #{tpu_custom_call.1} parent=5 // pred_check_branch
        %413 = sbr.rel (%p410) target = $region60
      $region59: #{tpu_custom_call.1} parent=5 // pred_region
        %s414 = ssub.s32 %s26, 1
        %s415 = sand.u32 %s53, 1
        %s416 = scalar_lea.sflag [#allocation5], %s415
        %s417 = sand.u32 %s53, 1
        %s418 = smul.addr %s417, 16
        %s419 = scalar_lea.vmem [#allocation4], %s418
        // Predicated region
        $region61: #{tpu_custom_call.1} parent=59 // pred_check
          %p420 = pneg %p66
        $region62: #{tpu_custom_call.1} parent=59 // pred_check_branch
          %422 = sbr.rel (%p420) target = $region64
        $region63: #{tpu_custom_call.1} parent=59 // pred_region
          %423 = dma.done %s416, 256
        $region64: #{tpu_custom_call.1} parent=59 // pred_fallthru
          _
        %s424 = sand.u32 %s31, 1
        %s425 = scalar_lea.sflag [#allocation8], %s424
        %s426 = sand.u32 %s89, 1
        %s427 = smul.addr %s426, 8
        %s428 = scalar_lea.vmem [#allocation7], %s427
        // Predicated region
        $region65: #{tpu_custom_call.1} parent=59 // pred_check
          %p429 = pneg %p102
        $region66: #{tpu_custom_call.1} parent=59 // pred_check_branch
          %431 = sbr.rel (%p429) target = $region68
        $region67: #{tpu_custom_call.1} parent=59 // pred_region
          %432 = dma.done %s425, 128
        $region68: #{tpu_custom_call.1} parent=59 // pred_fallthru
          _
        // Predicated region
        $region69: #{tpu_custom_call.1} parent=59 // pred_check
          %p433 = pneg %p123
        $region70: #{tpu_custom_call.1} parent=59 // pred_check_branch
          %435 = sbr.rel (%p433) target = $region72
        $region71: #{tpu_custom_call.1} parent=59 // pred_region
          %436 = dma.done [#allocation8], 6144
        $region72: #{tpu_custom_call.1} parent=59 // pred_fallthru
          _
        // Predicated region
        $region73: #{tpu_custom_call.1} parent=59 // pred_check
          %p437 = pneg %p207
        $region74: #{tpu_custom_call.1} parent=59 // pred_check_branch
          %439 = sbr.rel (%p437) target = $region76
        $region75: #{tpu_custom_call.1} parent=59 // pred_region
          %440 = dma.done [#allocation11], 6144
        $region76: #{tpu_custom_call.1} parent=59 // pred_fallthru
          _
        %s441 = sand.u32 %s53, 1
        %s442 = scalar_lea.sflag [#allocation5], %s441
        %s443 = sand.u32 %s53, 1
        %s444 = smul.addr %s443, 16
        %s445 = scalar_lea.vmem [#allocation4], %s444
        %p446 = pneg %p66
        %p447 = pneg %p63
        %s448 = sand.u32 %s31, 1
        %s449 = scalar_lea.sflag [#allocation8], %s448
        %s450 = sand.u32 %s89, 1
        %s451 = smul.addr %s450, 8
        %s452 = scalar_lea.vmem [#allocation7], %s451
        %p453 = pneg %p102
        %p454 = pneg %p99
        %p455 = pneg %p123
        %p456 = pneg %p120
        %p457 = pneg %p144
        %p458 = pneg %p141
        %p459 = pneg %p165
        %p460 = pneg %p162
        %p461 = pneg %p186
        %p462 = pneg %p183
        %p463 = pneg %p207
        %p464 = pneg %p204
        %p465 = pneg %p228
        %p466 = pneg %p225
        %p467 = pneg %p249
        %p468 = pneg %p246
        %p469 = pneg %p270
        %p470 = pneg %p267
        %p471 = pneg %p298
        %p472 = pneg %p295
        %s473 = sand.u32 %s285, 1
        %s474 = scalar_lea.sflag [#allocation6], %s473
        %s475 = sand.u32 %s285, 1
        %s476 = smul.addr %s475, 16
        %s477 = scalar_lea.vmem [#allocation12], %s476
        %s478 = smul.u32 2, %s36
        %s479 = smul.u32 %s36, 2
        %s480 = ssub.s32 %s479, 1
        %p481 = scmp.gt.s32.totalorder %s480, 0
        %s482 = scalar_select %p481, %s480, 0
        %s483 = smul.u32 2, %s36
        %p484 = scmp.eq.s32.totalorder %s36, 0
        // Predicated region
        $region77: #{tpu_custom_call.1} parent=59 // pred_check
          %p485 = pneg %p484
        $region78: #{tpu_custom_call.1} parent=59 // pred_check_branch
          %487 = sbr.rel (%p485) target = $region80
        $region79: #{tpu_custom_call.1} parent=59 // pred_region
          %488 = vst [vmem:[#allocation2] sm:$0xff] 0.0
        $region80: #{tpu_custom_call.1} parent=59 // pred_fallthru
          _
        %p489 = scmp.gt.s32.totalorder %s36, 0
        // Predicated region
        $region81: #{tpu_custom_call.1} parent=59 // pred_check
          %p490 = pneg %p489
        $region82: #{tpu_custom_call.1} parent=59 // pred_check_branch
          %492 = sbr.rel (%p490) target = $region84
        $region83: #{tpu_custom_call.1} parent=59 // pred_region
          %v493 = vld [vmem:[%s428] sm:$0xff]
          %494 = vst [vmem:[#allocation2] sm:$0xff] %v493
        $region84: #{tpu_custom_call.1} parent=59 // pred_fallthru
          _
        %v495 = vld [vmem:[%s419] sm:$0xff]
        %v496 = vld [vmem:[%s419 + $0x8] sm:$0xff]
        %497 = vst [vmem:[#allocation2 + $0x8] sm:$0xff] %v495
        %498 = vst [vmem:[#allocation2 + $0x10] sm:$0xff] %v496
        %v499 = vld [vmem:[#allocation2 + $0x2] sm:$0xff]
        %v500 = vld [vmem:[#allocation2 + $0xa] sm:$0xff]
        %v501 = vld [vmem:[#allocation2 + $0x12] sm:$0xf]
        %v502 = vld [vmem:[#allocation9] sm:$0xff]
        %v503 = vld [vmem:[#allocation9 + $0x8] sm:$0xff]
        %v504 = vld [vmem:[#allocation9 + $0x10] sm:$0xff]
        %v505 = vld [vmem:[#allocation9 + $0x18] sm:$0xff]
        %v506 = vld [vmem:[#allocation9 + $0x20] sm:$0xff]
        %v507 = vld [vmem:[#allocation9 + $0x28] sm:$0xff]
        %v508 = vld [vmem:[#allocation9 + $0x30] sm:$0xff]
        %v509 = vld [vmem:[#allocation9 + $0x38] sm:$0xff]
        %v510 = vld [vmem:[#allocation9 + $0x40] sm:$0xff]
        %v511 = vld [vmem:[#allocation9 + $0x48] sm:$0xff]
        %v512 = vld [vmem:[#allocation9 + $0x50] sm:$0xff]
        %v513 = vld [vmem:[#allocation9 + $0x58] sm:$0xff]
        %v514 = vld [vmem:[#allocation9 + $0x60] sm:$0xff]
        %v515 = vld [vmem:[#allocation9 + $0x68] sm:$0xff]
        %v516 = vld [vmem:[#allocation9 + $0x70] sm:$0xff]
        %v517 = vld [vmem:[#allocation9 + $0x78] sm:$0xff]
        %v518 = vld [vmem:[#allocation2 + $0x3] sm:$0xff]
        %v519 = vld [vmem:[#allocation2 + $0xb] sm:$0xff]
        %v520 = vld [vmem:[#allocation2 + $0x13] sm:$0xf]
        %s521 = scalar_lea.vmem [#allocation9], 128
        %v522 = vld [vmem:[%s521] sm:$0xff]
        %v523 = vld [vmem:[%s521 + $0x8] sm:$0xff]
        %v524 = vld [vmem:[%s521 + $0x10] sm:$0xff]
        %v525 = vld [vmem:[%s521 + $0x18] sm:$0xff]
        %v526 = vld [vmem:[%s521 + $0x20] sm:$0xff]
        %v527 = vld [vmem:[%s521 + $0x28] sm:$0xff]
        %v528 = vld [vmem:[%s521 + $0x30] sm:$0xff]
        %v529 = vld [vmem:[%s521 + $0x38] sm:$0xff]
        %v530 = vld [vmem:[%s521 + $0x40] sm:$0xff]
        %v531 = vld [vmem:[%s521 + $0x48] sm:$0xff]
        %v532 = vld [vmem:[%s521 + $0x50] sm:$0xff]
        %v533 = vld [vmem:[%s521 + $0x58] sm:$0xff]
        %v534 = vld [vmem:[%s521 + $0x60] sm:$0xff]
        %v535 = vld [vmem:[%s521 + $0x68] sm:$0xff]
        %v536 = vld [vmem:[%s521 + $0x70] sm:$0xff]
        %v537 = vld [vmem:[%s521 + $0x78] sm:$0xff]
        %538 = vmatprep.subr.mxu0 0.0
        %539 = vmatpush1.msra.mxu0 %v537
        %540 = vmatprep.subr.mxu0 0.0
        %541 = vmatpush1.msra.mxu0 %v536
        %542 = vmatprep.subr.mxu0 0.0
        %543 = vmatpush1.msra.mxu0 %v535
        %544 = vmatprep.subr.mxu0 0.0
        %545 = vmatpush1.msra.mxu0 %v534
        %546 = vmatprep.subr.mxu0 0.0
        %547 = vmatpush1.msra.mxu0 %v533
        %548 = vmatprep.subr.mxu0 0.0
        %549 = vmatpush1.msra.mxu0 %v532
        %550 = vmatprep.subr.mxu0 0.0
        %551 = vmatpush1.msra.mxu0 %v531
        %552 = vmatprep.subr.mxu0 0.0
        %553 = vmatpush1.msra.mxu0 %v530
        %554 = vmatprep.subr.mxu0 0.0
        %555 = vmatpush1.msra.mxu0 %v529
        %556 = vmatprep.subr.mxu0 0.0
        %557 = vmatpush1.msra.mxu0 %v528
        %558 = vmatprep.subr.mxu0 0.0
        %559 = vmatpush1.msra.mxu0 %v527
        %560 = vmatprep.subr.mxu0 0.0
        %561 = vmatpush1.msra.mxu0 %v526
        %562 = vmatprep.subr.mxu0 0.0
        %563 = vmatpush1.msra.mxu0 %v525
        %564 = vmatprep.subr.mxu0 0.0
        %565 = vmatpush1.msra.mxu0 %v524
        %566 = vmatprep.subr.mxu0 0.0
        %567 = vmatpush1.msra.mxu0 %v523
        %568 = vmatprep.subr.mxu0 0.0
        %569 = vmatpush1.msra.mxu0 %v522
        %570 = vmatprep.subr.mxu0 0.0
        %571 = vmatpush2.msra.mxu0 0.0
        %572 = vmatprep.subr.mxu0 0.0
        %573 = vmatpush2.msra.mxu0 0.0
        %574 = vmatprep.subr.mxu0 0.0
        %575 = vmatpush2.msra.mxu0 0.0
        %576 = vmatprep.subr.mxu0 0.0
        %577 = vmatpush2.msra.mxu0 0.0
        %578 = vmatprep.subr.mxu0 0.0
        %579 = vmatpush2.msra.mxu0 0.0
        %580 = vmatprep.subr.mxu0 0.0
        %581 = vmatpush2.msra.mxu0 0.0
        %582 = vmatprep.subr.mxu0 0.0
        %583 = vmatpush2.msra.mxu0 0.0
        %584 = vmatprep.subr.mxu0 0.0
        %585 = vmatpush2.msra.mxu0 0.0
        %586 = vmatprep.subr.mxu0 0.0
        %587 = vmatpush2.msra.mxu0 0.0
        %588 = vmatprep.subr.mxu0 0.0
        %589 = vmatpush2.msra.mxu0 0.0
        %590 = vmatprep.subr.mxu0 0.0
        %591 = vmatpush2.msra.mxu0 0.0
        %592 = vmatprep.subr.mxu0 0.0
        %593 = vmatpush2.msra.mxu0 0.0
        %594 = vmatprep.subr.mxu0 0.0
        %595 = vmatpush2.msra.mxu0 0.0
        %596 = vmatprep.subr.mxu0 0.0
        %597 = vmatpush2.msra.mxu0 0.0
        %598 = vmatprep.subr.mxu0 0.0
        %599 = vmatpush2.msra.mxu0 0.0
        %600 = vmatprep.subr.mxu0 0.0
        %601 = vmatpush2.msra.mxu0 0.0
        %602 = vmatprep.mubr.f32.mxu0 0.0
        %603 = vmatmul.mubr.f32.gmra.mxu0 %v518
        %v604 = vpop.f32.mrf.mxu0
        %v605 = vadd.f32 0.0, %v604
        %v606 = vpop.f32.mrf.mxu0
        %607 = vmatprep.mubr.f32.mxu0 0.0
        %608 = vmatmul.mubr.f32.gmra.mxu0 %v519
        %v609 = vpop.f32.mrf.mxu0
        %v610 = vadd.f32 0.0, %v609
        %v611 = vpop.f32.mrf.mxu0
        %612 = vmatprep.mubr.f32.mxu0 0.0
        %613 = vmatmul.mubr.f32.gmra.mxu0 %v520
        %v614 = vpop.f32.mrf.mxu0
        %v615 = vadd.f32 0.0, %v614
        %v616 = vpop.f32.mrf.mxu0
        %617 = vdwg.mxu0
        %618 = vmatprep.subr.mxu0 0.0
        %619 = vmatpush1.msra.mxu0 %v517
        %620 = vmatprep.subr.mxu0 0.0
        %621 = vmatpush1.msra.mxu0 %v516
        %622 = vmatprep.subr.mxu0 0.0
        %623 = vmatpush1.msra.mxu0 %v515
        %624 = vmatprep.subr.mxu0 0.0
        %625 = vmatpush1.msra.mxu0 %v514
        %626 = vmatprep.subr.mxu0 0.0
        %627 = vmatpush1.msra.mxu0 %v513
        %628 = vmatprep.subr.mxu0 0.0
        %629 = vmatpush1.msra.mxu0 %v512
        %630 = vmatprep.subr.mxu0 0.0
        %631 = vmatpush1.msra.mxu0 %v511
        %632 = vmatprep.subr.mxu0 0.0
        %633 = vmatpush1.msra.mxu0 %v510
        %634 = vmatprep.subr.mxu0 0.0
        %635 = vmatpush1.msra.mxu0 %v509
        %636 = vmatprep.subr.mxu0 0.0
        %637 = vmatpush1.msra.mxu0 %v508
        %638 = vmatprep.subr.mxu0 0.0
        %639 = vmatpush1.msra.mxu0 %v507
        %640 = vmatprep.subr.mxu0 0.0
        %641 = vmatpush1.msra.mxu0 %v506
        %642 = vmatprep.subr.mxu0 0.0
        %643 = vmatpush1.msra.mxu0 %v505
        %644 = vmatprep.subr.mxu0 0.0
        %645 = vmatpush1.msra.mxu0 %v504
        %646 = vmatprep.subr.mxu0 0.0
        %647 = vmatpush1.msra.mxu0 %v503
        %648 = vmatprep.subr.mxu0 0.0
        %649 = vmatpush1.msra.mxu0 %v502
        %650 = vmatprep.subr.mxu0 0.0
        %651 = vmatpush2.msra.mxu0 0.0
        %652 = vmatprep.subr.mxu0 0.0
        %653 = vmatpush2.msra.mxu0 0.0
        %654 = vmatprep.subr.mxu0 0.0
        %655 = vmatpush2.msra.mxu0 0.0
        %656 = vmatprep.subr.mxu0 0.0
        %657 = vmatpush2.msra.mxu0 0.0
        %658 = vmatprep.subr.mxu0 0.0
        %659 = vmatpush2.msra.mxu0 0.0
        %660 = vmatprep.subr.mxu0 0.0
        %661 = vmatpush2.msra.mxu0 0.0
        %662 = vmatprep.subr.mxu0 0.0
        %663 = vmatpush2.msra.mxu0 0.0
        %664 = vmatprep.subr.mxu0 0.0
        %665 = vmatpush2.msra.mxu0 0.0
        %666 = vmatprep.subr.mxu0 0.0
        %667 = vmatpush2.msra.mxu0 0.0
        %668 = vmatprep.subr.mxu0 0.0
        %669 = vmatpush2.msra.mxu0 0.0
        %670 = vmatprep.subr.mxu0 0.0
        %671 = vmatpush2.msra.mxu0 0.0
        %672 = vmatprep.subr.mxu0 0.0
        %673 = vmatpush2.msra.mxu0 0.0
        %674 = vmatprep.subr.mxu0 0.0
        %675 = vmatpush2.msra.mxu0 0.0
        %676 = vmatprep.subr.mxu0 0.0
        %677 = vmatpush2.msra.mxu0 0.0
        %678 = vmatprep.subr.mxu0 0.0
        %679 = vmatpush2.msra.mxu0 0.0
        %680 = vmatprep.subr.mxu0 0.0
        %681 = vmatpush2.msra.mxu0 0.0
        %682 = vmatprep.mubr.f32.mxu0 0.0
        %683 = vmatmul.mubr.f32.gmra.mxu0 %v499
        %v684 = vpop.f32.mrf.mxu0
        %v685 = vadd.f32 %v605, %v684
        %v686 = vpop.f32.mrf.mxu0
        %687 = vmatprep.mubr.f32.mxu0 0.0
        %688 = vmatmul.mubr.f32.gmra.mxu0 %v500
        %v689 = vpop.f32.mrf.mxu0
        %v690 = vadd.f32 %v610, %v689
        %v691 = vpop.f32.mrf.mxu0
        %692 = vmatprep.mubr.f32.mxu0 0.0
        %693 = vmatmul.mubr.f32.gmra.mxu0 %v501
        %v694 = vpop.f32.mrf.mxu0
        %v695 = vadd.f32 %v615, %v694
        %v696 = vpop.f32.mrf.mxu0
        %697 = vdwg.mxu0
        %v698 = vld [vmem:[#allocation2 + $0x4] sm:$0xff]
        %v699 = vld [vmem:[#allocation2 + $0xc] sm:$0xff]
        %v700 = vld [vmem:[#allocation2 + $0x14] sm:$0xf]
        %s701 = scalar_lea.vmem [#allocation9], 256
        %v702 = vld [vmem:[%s701] sm:$0xff]
        %v703 = vld [vmem:[%s701 + $0x8] sm:$0xff]
        %v704 = vld [vmem:[%s701 + $0x10] sm:$0xff]
        %v705 = vld [vmem:[%s701 + $0x18] sm:$0xff]
        %v706 = vld [vmem:[%s701 + $0x20] sm:$0xff]
        %v707 = vld [vmem:[%s701 + $0x28] sm:$0xff]
        %v708 = vld [vmem:[%s701 + $0x30] sm:$0xff]
        %v709 = vld [vmem:[%s701 + $0x38] sm:$0xff]
        %v710 = vld [vmem:[%s701 + $0x40] sm:$0xff]
        %v711 = vld [vmem:[%s701 + $0x48] sm:$0xff]
        %v712 = vld [vmem:[%s701 + $0x50] sm:$0xff]
        %v713 = vld [vmem:[%s701 + $0x58] sm:$0xff]
        %v714 = vld [vmem:[%s701 + $0x60] sm:$0xff]
        %v715 = vld [vmem:[%s701 + $0x68] sm:$0xff]
        %v716 = vld [vmem:[%s701 + $0x70] sm:$0xff]
        %v717 = vld [vmem:[%s701 + $0x78] sm:$0xff]
        %718 = vmatprep.subr.mxu0 0.0
        %719 = vmatpush1.msra.mxu0 %v717
        %720 = vmatprep.subr.mxu0 0.0
        %721 = vmatpush1.msra.mxu0 %v716
        %722 = vmatprep.subr.mxu0 0.0
        %723 = vmatpush1.msra.mxu0 %v715
        %724 = vmatprep.subr.mxu0 0.0
        %725 = vmatpush1.msra.mxu0 %v714
        %726 = vmatprep.subr.mxu0 0.0
        %727 = vmatpush1.msra.mxu0 %v713
        %728 = vmatprep.subr.mxu0 0.0
        %729 = vmatpush1.msra.mxu0 %v712
        %730 = vmatprep.subr.mxu0 0.0
        %731 = vmatpush1.msra.mxu0 %v711
        %732 = vmatprep.subr.mxu0 0.0
        %733 = vmatpush1.msra.mxu0 %v710
        %734 = vmatprep.subr.mxu0 0.0
        %735 = vmatpush1.msra.mxu0 %v709
        %736 = vmatprep.subr.mxu0 0.0
        %737 = vmatpush1.msra.mxu0 %v708
        %738 = vmatprep.subr.mxu0 0.0
        %739 = vmatpush1.msra.mxu0 %v707
        %740 = vmatprep.subr.mxu0 0.0
        %741 = vmatpush1.msra.mxu0 %v706
        %742 = vmatprep.subr.mxu0 0.0
        %743 = vmatpush1.msra.mxu0 %v705
        %744 = vmatprep.subr.mxu0 0.0
        %745 = vmatpush1.msra.mxu0 %v704
        %746 = vmatprep.subr.mxu0 0.0
        %747 = vmatpush1.msra.mxu0 %v703
        %748 = vmatprep.subr.mxu0 0.0
        %749 = vmatpush1.msra.mxu0 %v702
        %750 = vmatprep.subr.mxu0 0.0
        %751 = vmatpush2.msra.mxu0 0.0
        %752 = vmatprep.subr.mxu0 0.0
        %753 = vmatpush2.msra.mxu0 0.0
        %754 = vmatprep.subr.mxu0 0.0
        %755 = vmatpush2.msra.mxu0 0.0
        %756 = vmatprep.subr.mxu0 0.0
        %757 = vmatpush2.msra.mxu0 0.0
        %758 = vmatprep.subr.mxu0 0.0
        %759 = vmatpush2.msra.mxu0 0.0
        %760 = vmatprep.subr.mxu0 0.0
        %761 = vmatpush2.msra.mxu0 0.0
        %762 = vmatprep.subr.mxu0 0.0
        %763 = vmatpush2.msra.mxu0 0.0
        %764 = vmatprep.subr.mxu0 0.0
        %765 = vmatpush2.msra.mxu0 0.0
        %766 = vmatprep.subr.mxu0 0.0
        %767 = vmatpush2.msra.mxu0 0.0
        %768 = vmatprep.subr.mxu0 0.0
        %769 = vmatpush2.msra.mxu0 0.0
        %770 = vmatprep.subr.mxu0 0.0
        %771 = vmatpush2.msra.mxu0 0.0
        %772 = vmatprep.subr.mxu0 0.0
        %773 = vmatpush2.msra.mxu0 0.0
        %774 = vmatprep.subr.mxu0 0.0
        %775 = vmatpush2.msra.mxu0 0.0
        %776 = vmatprep.subr.mxu0 0.0
        %777 = vmatpush2.msra.mxu0 0.0
        %778 = vmatprep.subr.mxu0 0.0
        %779 = vmatpush2.msra.mxu0 0.0
        %780 = vmatprep.subr.mxu0 0.0
        %781 = vmatpush2.msra.mxu0 0.0
        %782 = vmatprep.mubr.f32.mxu0 0.0
        %783 = vmatmul.mubr.f32.gmra.mxu0 %v698
        %v784 = vpop.f32.mrf.mxu0
        %v785 = vadd.f32 0.0, %v784
        %v786 = vpop.f32.mrf.mxu0
        %787 = vmatprep.mubr.f32.mxu0 0.0
        %788 = vmatmul.mubr.f32.gmra.mxu0 %v699
        %v789 = vpop.f32.mrf.mxu0
        %v790 = vadd.f32 0.0, %v789
        %v791 = vpop.f32.mrf.mxu0
        %792 = vmatprep.mubr.f32.mxu0 0.0
        %793 = vmatmul.mubr.f32.gmra.mxu0 %v700
        %v794 = vpop.f32.mrf.mxu0
        %v795 = vadd.f32 0.0, %v794
        %v796 = vpop.f32.mrf.mxu0
        %797 = vdwg.mxu0
        %v798 = vadd.f32 %v685, %v785
        %v799 = vadd.f32 %v690, %v790
        %v800 = vadd.f32 %v695, %v795
        %v801 = vld [vmem:[%s3] sm:$0x1]
        %v803 = vlaneseq
        %v804 = vshrl.u32 %v803, 7
        %v805 = vsub.s32 0, %v804
        %v806 = vrot.slane %v801, %v805
        %v808 = vadd.f32 %v798, %v806
        %v809 = vadd.f32 %v799, %v806
        %v810 = vadd.f32 %v800, %v806
        %811 = vadd.xlane.f32.xlu0 %v808
        %v812 = vpop.xlane.xlu0 %811
        %813 = vadd.xlane.f32.xlu0 %v809
        %v814 = vpop.xlane.xlu0 %813
        %vm815 = vcmask 1043456
        %v816 = vsel %vm815, %v810, 0.0
        %817 = vadd.xlane.f32.xlu0 %v816
        %v818 = vpop.xlane.xlu0 %817
        %v819 = vmul.f32 %v808, %v808
        %v820 = vmul.f32 %v809, %v809
        %v821 = vmul.f32 %v810, %v810
        %822 = vadd.xlane.f32.xlu0 %v819
        %v823 = vpop.xlane.xlu0 %822
        %824 = vadd.xlane.f32.xlu0 %v820
        %v825 = vpop.xlane.xlu0 %824
        %v826 = vsel %vm815, %v821, 0.0
        %827 = vadd.xlane.f32.xlu0 %v826
        %v828 = vpop.xlane.xlu0 %827
        %v829 = vmul.f32 %v812, 0.03125
        %v830 = vmul.f32 %v814, 0.03125
        %v831 = vmul.f32 %v818, 0.03125
        %v832 = vmul.f32 %v823, 0.03125
        %v833 = vmul.f32 %v825, 0.03125
        %v834 = vmul.f32 %v828, 0.03125
        %v835 = vmul.f32 %v829, %v829
        %v836 = vmul.f32 %v830, %v830
        %v837 = vmul.f32 %v831, %v831
        %v838 = vsub.f32 %v832, %v835
        %v839 = vsub.f32 %v833, %v836
        %v840 = vsub.f32 %v834, %v837
        %v841 = vmax.f32 %v838, 0.0
        %v842 = vmax.f32 %v839, 0.0
        %v843 = vmax.f32 %v840, 0.0
        %v844 = vsub.f32 %v808, %v829
        %v845 = vsub.f32 %v809, %v830
        %v846 = vsub.f32 %v810, %v831
        %v847 = vadd.f32 %v841, 1e-08
        %v848 = vadd.f32 %v842, 1e-08
        %v849 = vadd.f32 %v843, 1e-08
        %v850 = vrsqrt.pop %v847
        %v851 = vrsqrt.pop %v848
        %v852 = vrsqrt.pop %v849
        %v853 = vmul.f32 %v844, %v850
        %v854 = vmul.f32 %v845, %v851
        %v855 = vmul.f32 %v846, %v852
        %v856 = vld [vmem:[%s4] sm:$0x1]
        %v858 = vlaneseq
        %v859 = vshrl.u32 %v858, 7
        %v860 = vsub.s32 0, %v859
        %v861 = vrot.slane %v856, %v860
        %v863 = vmul.f32 %v853, %v861
        %v864 = vmul.f32 %v854, %v861
        %v865 = vmul.f32 %v855, %v861
        %v866 = vld [vmem:[%s5] sm:$0x1]
        %v868 = vlaneseq
        %v869 = vshrl.u32 %v868, 7
        %v870 = vsub.s32 0, %v869
        %v871 = vrot.slane %v866, %v870
        %v873 = vadd.f32 %v863, %v871
        %v874 = vadd.f32 %v864, %v871
        %v875 = vadd.f32 %v865, %v871
        %v876 = vmax.f32 %v873, 0.0
        %v877 = vmax.f32 %v874, 0.0
        %v878 = vmax.f32 %v875, 0.0
        %879 = vst [vmem:[#allocation3] sm:$0xff] %v876
        %880 = vst [vmem:[#allocation3 + $0x8] sm:$0xff] %v877
        %881 = vst [vmem:[#allocation3 + $0x10] sm:$0xf] %v878
        // Predicated region
        $region85: #{tpu_custom_call.1} parent=59 // pred_check
          %p882 = pneg %p484
        $region86: #{tpu_custom_call.1} parent=59 // pred_check_branch
          %884 = sbr.rel (%p882) target = $region88
        $region87: #{tpu_custom_call.1} parent=59 // pred_region
          %885 = vst [vmem:[#allocation3] sm:$0xf] 0.0
        $region88: #{tpu_custom_call.1} parent=59 // pred_fallthru
          _
        %v886 = vld [vmem:[#allocation3] sm:$0xff]
        %v887 = vld [vmem:[#allocation3 + $0x8] sm:$0xff]
        %v888 = vld [vmem:[#allocation10] sm:$0xff]
        %v889 = vld [vmem:[#allocation10 + $0x8] sm:$0xff]
        %v890 = vld [vmem:[#allocation10 + $0x10] sm:$0xff]
        %v891 = vld [vmem:[#allocation10 + $0x18] sm:$0xff]
        %v892 = vld [vmem:[#allocation10 + $0x20] sm:$0xff]
        %v893 = vld [vmem:[#allocation10 + $0x28] sm:$0xff]
        %v894 = vld [vmem:[#allocation10 + $0x30] sm:$0xff]
        %v895 = vld [vmem:[#allocation10 + $0x38] sm:$0xff]
        %v896 = vld [vmem:[#allocation10 + $0x40] sm:$0xff]
        %v897 = vld [vmem:[#allocation10 + $0x48] sm:$0xff]
        %v898 = vld [vmem:[#allocation10 + $0x50] sm:$0xff]
        %v899 = vld [vmem:[#allocation10 + $0x58] sm:$0xff]
        %v900 = vld [vmem:[#allocation10 + $0x60] sm:$0xff]
        %v901 = vld [vmem:[#allocation10 + $0x68] sm:$0xff]
        %v902 = vld [vmem:[#allocation10 + $0x70] sm:$0xff]
        %v903 = vld [vmem:[#allocation10 + $0x78] sm:$0xff]
        %v904 = vld [vmem:[#allocation3 + $0x2] sm:$0xff]
        %v905 = vld [vmem:[#allocation3 + $0xa] sm:$0xff]
        %s906 = scalar_lea.vmem [#allocation10], 128
        %v907 = vld [vmem:[%s906] sm:$0xff]
        %v908 = vld [vmem:[%s906 + $0x8] sm:$0xff]
        %v909 = vld [vmem:[%s906 + $0x10] sm:$0xff]
        %v910 = vld [vmem:[%s906 + $0x18] sm:$0xff]
        %v911 = vld [vmem:[%s906 + $0x20] sm:$0xff]
        %v912 = vld [vmem:[%s906 + $0x28] sm:$0xff]
        %v913 = vld [vmem:[%s906 + $0x30] sm:$0xff]
        %v914 = vld [vmem:[%s906 + $0x38] sm:$0xff]
        %v915 = vld [vmem:[%s906 + $0x40] sm:$0xff]
        %v916 = vld [vmem:[%s906 + $0x48] sm:$0xff]
        %v917 = vld [vmem:[%s906 + $0x50] sm:$0xff]
        %v918 = vld [vmem:[%s906 + $0x58] sm:$0xff]
        %v919 = vld [vmem:[%s906 + $0x60] sm:$0xff]
        %v920 = vld [vmem:[%s906 + $0x68] sm:$0xff]
        %v921 = vld [vmem:[%s906 + $0x70] sm:$0xff]
        %v922 = vld [vmem:[%s906 + $0x78] sm:$0xff]
        %923 = vmatprep.subr.mxu0 0.0
        %924 = vmatpush1.msra.mxu0 %v922
        %925 = vmatprep.subr.mxu0 0.0
        %926 = vmatpush1.msra.mxu0 %v921
        %927 = vmatprep.subr.mxu0 0.0
        %928 = vmatpush1.msra.mxu0 %v920
        %929 = vmatprep.subr.mxu0 0.0
        %930 = vmatpush1.msra.mxu0 %v919
        %931 = vmatprep.subr.mxu0 0.0
        %932 = vmatpush1.msra.mxu0 %v918
        %933 = vmatprep.subr.mxu0 0.0
        %934 = vmatpush1.msra.mxu0 %v917
        %935 = vmatprep.subr.mxu0 0.0
        %936 = vmatpush1.msra.mxu0 %v916
        %937 = vmatprep.subr.mxu0 0.0
        %938 = vmatpush1.msra.mxu0 %v915
        %939 = vmatprep.subr.mxu0 0.0
        %940 = vmatpush1.msra.mxu0 %v914
        %941 = vmatprep.subr.mxu0 0.0
        %942 = vmatpush1.msra.mxu0 %v913
        %943 = vmatprep.subr.mxu0 0.0
        %944 = vmatpush1.msra.mxu0 %v912
        %945 = vmatprep.subr.mxu0 0.0
        %946 = vmatpush1.msra.mxu0 %v911
        %947 = vmatprep.subr.mxu0 0.0
        %948 = vmatpush1.msra.mxu0 %v910
        %949 = vmatprep.subr.mxu0 0.0
        %950 = vmatpush1.msra.mxu0 %v909
        %951 = vmatprep.subr.mxu0 0.0
        %952 = vmatpush1.msra.mxu0 %v908
        %953 = vmatprep.subr.mxu0 0.0
        %954 = vmatpush1.msra.mxu0 %v907
        %955 = vmatprep.subr.mxu0 0.0
        %956 = vmatpush2.msra.mxu0 0.0
        %957 = vmatprep.subr.mxu0 0.0
        %958 = vmatpush2.msra.mxu0 0.0
        %959 = vmatprep.subr.mxu0 0.0
        %960 = vmatpush2.msra.mxu0 0.0
        %961 = vmatprep.subr.mxu0 0.0
        %962 = vmatpush2.msra.mxu0 0.0
        %963 = vmatprep.subr.mxu0 0.0
        %964 = vmatpush2.msra.mxu0 0.0
        %965 = vmatprep.subr.mxu0 0.0
        %966 = vmatpush2.msra.mxu0 0.0
        %967 = vmatprep.subr.mxu0 0.0
        %968 = vmatpush2.msra.mxu0 0.0
        %969 = vmatprep.subr.mxu0 0.0
        %970 = vmatpush2.msra.mxu0 0.0
        %971 = vmatprep.subr.mxu0 0.0
        %972 = vmatpush2.msra.mxu0 0.0
        %973 = vmatprep.subr.mxu0 0.0
        %974 = vmatpush2.msra.mxu0 0.0
        %975 = vmatprep.subr.mxu0 0.0
        %976 = vmatpush2.msra.mxu0 0.0
        %977 = vmatprep.subr.mxu0 0.0
        %978 = vmatpush2.msra.mxu0 0.0
        %979 = vmatprep.subr.mxu0 0.0
        %980 = vmatpush2.msra.mxu0 0.0
        %981 = vmatprep.subr.mxu0 0.0
        %982 = vmatpush2.msra.mxu0 0.0
        %983 = vmatprep.subr.mxu0 0.0
        %984 = vmatpush2.msra.mxu0 0.0
        %985 = vmatprep.subr.mxu0 0.0
        %986 = vmatpush2.msra.mxu0 0.0
        %987 = vmatprep.mubr.f32.mxu0 0.0
        %988 = vmatmul.mubr.f32.gmra.mxu0 %v904
        %v989 = vpop.f32.mrf.mxu0
        %v990 = vadd.f32 0.0, %v989
        %v991 = vpop.f32.mrf.mxu0
        %992 = vmatprep.mubr.f32.mxu0 0.0
        %993 = vmatmul.mubr.f32.gmra.mxu0 %v905
        %v994 = vpop.f32.mrf.mxu0
        %v995 = vadd.f32 0.0, %v994
        %v996 = vpop.f32.mrf.mxu0
        %997 = vdwg.mxu0
        %998 = vmatprep.subr.mxu0 0.0
        %999 = vmatpush1.msra.mxu0 %v903
        %1000 = vmatprep.subr.mxu0 0.0
        %1001 = vmatpush1.msra.mxu0 %v902
        %1002 = vmatprep.subr.mxu0 0.0
        %1003 = vmatpush1.msra.mxu0 %v901
        %1004 = vmatprep.subr.mxu0 0.0
        %1005 = vmatpush1.msra.mxu0 %v900
        %1006 = vmatprep.subr.mxu0 0.0
        %1007 = vmatpush1.msra.mxu0 %v899
        %1008 = vmatprep.subr.mxu0 0.0
        %1009 = vmatpush1.msra.mxu0 %v898
        %1010 = vmatprep.subr.mxu0 0.0
        %1011 = vmatpush1.msra.mxu0 %v897
        %1012 = vmatprep.subr.mxu0 0.0
        %1013 = vmatpush1.msra.mxu0 %v896
        %1014 = vmatprep.subr.mxu0 0.0
        %1015 = vmatpush1.msra.mxu0 %v895
        %1016 = vmatprep.subr.mxu0 0.0
        %1017 = vmatpush1.msra.mxu0 %v894
        %1018 = vmatprep.subr.mxu0 0.0
        %1019 = vmatpush1.msra.mxu0 %v893
        %1020 = vmatprep.subr.mxu0 0.0
        %1021 = vmatpush1.msra.mxu0 %v892
        %1022 = vmatprep.subr.mxu0 0.0
        %1023 = vmatpush1.msra.mxu0 %v891
        %1024 = vmatprep.subr.mxu0 0.0
        %1025 = vmatpush1.msra.mxu0 %v890
        %1026 = vmatprep.subr.mxu0 0.0
        %1027 = vmatpush1.msra.mxu0 %v889
        %1028 = vmatprep.subr.mxu0 0.0
        %1029 = vmatpush1.msra.mxu0 %v888
        %1030 = vmatprep.subr.mxu0 0.0
        %1031 = vmatpush2.msra.mxu0 0.0
        %1032 = vmatprep.subr.mxu0 0.0
        %1033 = vmatpush2.msra.mxu0 0.0
        %1034 = vmatprep.subr.mxu0 0.0
        %1035 = vmatpush2.msra.mxu0 0.0
        %1036 = vmatprep.subr.mxu0 0.0
        %1037 = vmatpush2.msra.mxu0 0.0
        %1038 = vmatprep.subr.mxu0 0.0
        %1039 = vmatpush2.msra.mxu0 0.0
        %1040 = vmatprep.subr.mxu0 0.0
        %1041 = vmatpush2.msra.mxu0 0.0
        %1042 = vmatprep.subr.mxu0 0.0
        %1043 = vmatpush2.msra.mxu0 0.0
        %1044 = vmatprep.subr.mxu0 0.0
        %1045 = vmatpush2.msra.mxu0 0.0
        %1046 = vmatprep.subr.mxu0 0.0
        %1047 = vmatpush2.msra.mxu0 0.0
        %1048 = vmatprep.subr.mxu0 0.0
        %1049 = vmatpush2.msra.mxu0 0.0
        %1050 = vmatprep.subr.mxu0 0.0
        %1051 = vmatpush2.msra.mxu0 0.0
        %1052 = vmatprep.subr.mxu0 0.0
        %1053 = vmatpush2.msra.mxu0 0.0
        %1054 = vmatprep.subr.mxu0 0.0
        %1055 = vmatpush2.msra.mxu0 0.0
        %1056 = vmatprep.subr.mxu0 0.0
        %1057 = vmatpush2.msra.mxu0 0.0
        %1058 = vmatprep.subr.mxu0 0.0
        %1059 = vmatpush2.msra.mxu0 0.0
        %1060 = vmatprep.subr.mxu0 0.0
        %1061 = vmatpush2.msra.mxu0 0.0
        %1062 = vmatprep.mubr.f32.mxu0 0.0
        %1063 = vmatmul.mubr.f32.gmra.mxu0 %v886
        %v1064 = vpop.f32.mrf.mxu0
        %v1065 = vadd.f32 %v990, %v1064
        %v1066 = vpop.f32.mrf.mxu0
        %1067 = vmatprep.mubr.f32.mxu0 0.0
        %1068 = vmatmul.mubr.f32.gmra.mxu0 %v887
        %v1069 = vpop.f32.mrf.mxu0
        %v1070 = vadd.f32 %v995, %v1069
        %v1071 = vpop.f32.mrf.mxu0
        %1072 = vdwg.mxu0
        %v1073 = vld [vmem:[#allocation3 + $0x4] sm:$0xff]
        %v1074 = vld [vmem:[#allocation3 + $0xc] sm:$0xff]
        %s1075 = scalar_lea.vmem [#allocation10], 256
        %v1076 = vld [vmem:[%s1075] sm:$0xff]
        %v1077 = vld [vmem:[%s1075 + $0x8] sm:$0xff]
        %v1078 = vld [vmem:[%s1075 + $0x10] sm:$0xff]
        %v1079 = vld [vmem:[%s1075 + $0x18] sm:$0xff]
        %v1080 = vld [vmem:[%s1075 + $0x20] sm:$0xff]
        %v1081 = vld [vmem:[%s1075 + $0x28] sm:$0xff]
        %v1082 = vld [vmem:[%s1075 + $0x30] sm:$0xff]
        %v1083 = vld [vmem:[%s1075 + $0x38] sm:$0xff]
        %v1084 = vld [vmem:[%s1075 + $0x40] sm:$0xff]
        %v1085 = vld [vmem:[%s1075 + $0x48] sm:$0xff]
        %v1086 = vld [vmem:[%s1075 + $0x50] sm:$0xff]
        %v1087 = vld [vmem:[%s1075 + $0x58] sm:$0xff]
        %v1088 = vld [vmem:[%s1075 + $0x60] sm:$0xff]
        %v1089 = vld [vmem:[%s1075 + $0x68] sm:$0xff]
        %v1090 = vld [vmem:[%s1075 + $0x70] sm:$0xff]
        %v1091 = vld [vmem:[%s1075 + $0x78] sm:$0xff]
        %1092 = vmatprep.subr.mxu0 0.0
        %1093 = vmatpush1.msra.mxu0 %v1091
        %1094 = vmatprep.subr.mxu0 0.0
        %1095 = vmatpush1.msra.mxu0 %v1090
        %1096 = vmatprep.subr.mxu0 0.0
        %1097 = vmatpush1.msra.mxu0 %v1089
        %1098 = vmatprep.subr.mxu0 0.0
        %1099 = vmatpush1.msra.mxu0 %v1088
        %1100 = vmatprep.subr.mxu0 0.0
        %1101 = vmatpush1.msra.mxu0 %v1087
        %1102 = vmatprep.subr.mxu0 0.0
        %1103 = vmatpush1.msra.mxu0 %v1086
        %1104 = vmatprep.subr.mxu0 0.0
        %1105 = vmatpush1.msra.mxu0 %v1085
        %1106 = vmatprep.subr.mxu0 0.0
        %1107 = vmatpush1.msra.mxu0 %v1084
        %1108 = vmatprep.subr.mxu0 0.0
        %1109 = vmatpush1.msra.mxu0 %v1083
        %1110 = vmatprep.subr.mxu0 0.0
        %1111 = vmatpush1.msra.mxu0 %v1082
        %1112 = vmatprep.subr.mxu0 0.0
        %1113 = vmatpush1.msra.mxu0 %v1081
        %1114 = vmatprep.subr.mxu0 0.0
        %1115 = vmatpush1.msra.mxu0 %v1080
        %1116 = vmatprep.subr.mxu0 0.0
        %1117 = vmatpush1.msra.mxu0 %v1079
        %1118 = vmatprep.subr.mxu0 0.0
        %1119 = vmatpush1.msra.mxu0 %v1078
        %1120 = vmatprep.subr.mxu0 0.0
        %1121 = vmatpush1.msra.mxu0 %v1077
        %1122 = vmatprep.subr.mxu0 0.0
        %1123 = vmatpush1.msra.mxu0 %v1076
        %1124 = vmatprep.subr.mxu0 0.0
        %1125 = vmatpush2.msra.mxu0 0.0
        %1126 = vmatprep.subr.mxu0 0.0
        %1127 = vmatpush2.msra.mxu0 0.0
        %1128 = vmatprep.subr.mxu0 0.0
        %1129 = vmatpush2.msra.mxu0 0.0
        %1130 = vmatprep.subr.mxu0 0.0
        %1131 = vmatpush2.msra.mxu0 0.0
        %1132 = vmatprep.subr.mxu0 0.0
        %1133 = vmatpush2.msra.mxu0 0.0
        %1134 = vmatprep.subr.mxu0 0.0
        %1135 = vmatpush2.msra.mxu0 0.0
        %1136 = vmatprep.subr.mxu0 0.0
        %1137 = vmatpush2.msra.mxu0 0.0
        %1138 = vmatprep.subr.mxu0 0.0
        %1139 = vmatpush2.msra.mxu0 0.0
        %1140 = vmatprep.subr.mxu0 0.0
        %1141 = vmatpush2.msra.mxu0 0.0
        %1142 = vmatprep.subr.mxu0 0.0
        %1143 = vmatpush2.msra.mxu0 0.0
        %1144 = vmatprep.subr.mxu0 0.0
        %1145 = vmatpush2.msra.mxu0 0.0
        %1146 = vmatprep.subr.mxu0 0.0
        %1147 = vmatpush2.msra.mxu0 0.0
        %1148 = vmatprep.subr.mxu0 0.0
        %1149 = vmatpush2.msra.mxu0 0.0
        %1150 = vmatprep.subr.mxu0 0.0
        %1151 = vmatpush2.msra.mxu0 0.0
        %1152 = vmatprep.subr.mxu0 0.0
        %1153 = vmatpush2.msra.mxu0 0.0
        %1154 = vmatprep.subr.mxu0 0.0
        %1155 = vmatpush2.msra.mxu0 0.0
        %1156 = vmatprep.mubr.f32.mxu0 0.0
        %1157 = vmatmul.mubr.f32.gmra.mxu0 %v1073
        %v1158 = vpop.f32.mrf.mxu0
        %v1159 = vadd.f32 0.0, %v1158
        %v1160 = vpop.f32.mrf.mxu0
        %1161 = vmatprep.mubr.f32.mxu0 0.0
        %1162 = vmatmul.mubr.f32.gmra.mxu0 %v1074
        %v1163 = vpop.f32.mrf.mxu0
        %v1164 = vadd.f32 0.0, %v1163
        %v1165 = vpop.f32.mrf.mxu0
        %1166 = vdwg.mxu0
        %v1167 = vadd.f32 %v1065, %v1159
        %v1168 = vadd.f32 %v1070, %v1164
        %v1169 = vld [vmem:[%s7] sm:$0x1]
        %v1171 = vlaneseq
        %v1172 = vshrl.u32 %v1171, 7
        %v1173 = vsub.s32 0, %v1172
        %v1174 = vrot.slane %v1169, %v1173
        %v1176 = vadd.f32 %v1167, %v1174
        %v1177 = vadd.f32 %v1168, %v1174
        %1178 = vadd.xlane.f32.xlu0 %v1176
        %v1179 = vpop.xlane.xlu0 %1178
        %1180 = vadd.xlane.f32.xlu0 %v1177
        %v1181 = vpop.xlane.xlu0 %1180
        %v1182 = vmul.f32 %v1176, %v1176
        %v1183 = vmul.f32 %v1177, %v1177
        %1184 = vadd.xlane.f32.xlu0 %v1182
        %v1185 = vpop.xlane.xlu0 %1184
        %1186 = vadd.xlane.f32.xlu0 %v1183
        %v1187 = vpop.xlane.xlu0 %1186
        %v1188 = vmul.f32 %v1179, 0.03125
        %v1189 = vmul.f32 %v1181, 0.03125
        %v1190 = vmul.f32 %v1185, 0.03125
        %v1191 = vmul.f32 %v1187, 0.03125
        %v1192 = vmul.f32 %v1188, %v1188
        %v1193 = vmul.f32 %v1189, %v1189
        %v1194 = vsub.f32 %v1190, %v1192
        %v1195 = vsub.f32 %v1191, %v1193
        %v1196 = vmax.f32 %v1194, 0.0
        %v1197 = vmax.f32 %v1195, 0.0
        %v1198 = vsub.f32 %v1176, %v1188
        %v1199 = vsub.f32 %v1177, %v1189
        %v1200 = vadd.f32 %v1196, 1e-08
        %v1201 = vadd.f32 %v1197, 1e-08
        %v1202 = vrsqrt.pop %v1200
        %v1203 = vrsqrt.pop %v1201
        %v1204 = vmul.f32 %v1198, %v1202
        %v1205 = vmul.f32 %v1199, %v1203
        %v1206 = vld [vmem:[%s8] sm:$0x1]
        %v1208 = vlaneseq
        %v1209 = vshrl.u32 %v1208, 7
        %v1210 = vsub.s32 0, %v1209
        %v1211 = vrot.slane %v1206, %v1210
        %v1213 = vmul.f32 %v1204, %v1211
        %v1214 = vmul.f32 %v1205, %v1211
        %v1215 = vld [vmem:[%s9] sm:$0x1]
        %v1217 = vlaneseq
        %v1218 = vshrl.u32 %v1217, 7
        %v1219 = vsub.s32 0, %v1218
        %v1220 = vrot.slane %v1215, %v1219
        %v1222 = vadd.f32 %v1213, %v1220
        %v1223 = vadd.f32 %v1214, %v1220
        %v1224 = vmax.f32 %v1222, 0.0
        %v1225 = vmax.f32 %v1223, 0.0
        %v1226 = vld [vmem:[%s419] sm:$0xff]
        %v1227 = vld [vmem:[%s419 + $0x8] sm:$0xff]
        %v1228 = vadd.f32 %v1224, %v1226
        %v1229 = vadd.f32 %v1225, %v1227
        %1230 = vst [vmem:[%s477] sm:$0xff] %v1228
        %1231 = vst [vmem:[%s477 + $0x8] sm:$0xff] %v1229
        %s1232 = sand.u32 %s285, 1
        %s1233 = scalar_lea.sflag [#allocation6], %s1232
        %s1234 = sand.u32 %s285, 1
        %s1235 = smul.addr %s1234, 16
        %s1236 = scalar_lea.vmem [#allocation12], %s1235
        // Predicated region
        $region89: #{tpu_custom_call.1} parent=59 // pred_check
          %p1237 = pneg %p295
        $region90: #{tpu_custom_call.1} parent=59 // pred_check_branch
          %1239 = sbr.rel (%p1237) target = $region92
        $region91: #{tpu_custom_call.1} parent=59 // pred_region
          %s1240 = smul.u32 2, %s36
          %s1242 = ssub.s32 256, 256
          %1243 = vsyncadd %s1233, %s1242
          %s1244 = smul.addr %s35, 6
          %s1245 = sadd.s32 %s1240, %s1244
          %s1246 = smul.addr %s1245, 128
          %s1247 = scalar_lea.hbm %s10, %s1246
          %s1248 = sshll.u32 %s1236, 4
          %s1249 = int_to_ptr.vmem [resolvable:$true] %s1248
          %1254 = dma.vmem_to_hbm [thread:$0]  %s1249, 256, %s1247, %s1233, 128, 128, 8
        $region92: #{tpu_custom_call.1} parent=59 // pred_fallthru
          _
      $region60: #{tpu_custom_call.1} parent=5 // pred_fallthru
        _
      %p1255 = scmp.le.s32.totalorder 2, %s26
      // Predicated region
      $region93: #{tpu_custom_call.1} parent=5 // pred_check
        %p1256 = pneg %p1255
      $region94: #{tpu_custom_call.1} parent=5 // pred_check_branch
        %1258 = sbr.rel (%p1256) target = $region96
      $region95: #{tpu_custom_call.1} parent=5 // pred_region
        %s1259 = ssub.s32 %s26, 2
        // Predicated region
        $region97: #{tpu_custom_call.1} parent=95 // pred_check
          %p1260 = pneg %p301
        $region98: #{tpu_custom_call.1} parent=95 // pred_check_branch
          %1262 = sbr.rel (%p1260) target = $region100
        $region99: #{tpu_custom_call.1} parent=95 // pred_region
          %s1263 = sand.u32 %s286, 1
          %s1264 = scalar_lea.sflag [#allocation6], %s1263
          %s1265 = sand.u32 %s286, 1
          %s1266 = smul.addr %s1265, 16
          %s1267 = scalar_lea.vmem [#allocation12], %s1266
          %1268 = dma.done %s1264, 256
        $region100: #{tpu_custom_call.1} parent=95 // pred_fallthru
          _
      $region96: #{tpu_custom_call.1} parent=5 // pred_fallthru
        _
    $region6: #{tpu_custom_call.1} parent=1 // loop_footer
      %s30 = sadd.s32 1, %s26
    $region7: #{tpu_custom_call.1} parent=1 // loop_footer_branch
      %25 = sbr.rel target = $region3
    $region8: #{tpu_custom_call.1} parent=1 // loop_exit
      _
    %1269 = vsyncpa [#allocation5], 1
    %s1270 = scalar_lea.sflag [#allocation5], 1
    %1271 = vsyncpa %s1270, 1
    %1272 = vsyncpa [#allocation8], 1
    %s1273 = scalar_lea.sflag [#allocation8], 1
    %1274 = vsyncpa %s1273, 1
    %1275 = vsyncpa [#allocation11], 1
    %1276 = vsyncpa [#allocation6], 1
    %s1277 = scalar_lea.sflag [#allocation6], 1
    %1278 = vsyncpa %s1277, 1

</llo_original>
